<compile_context>
chip_gen: v7x
topology: tpu7x:2x2x1
jax: 0.10.0
libtpu: 0.0.40
codegen_flags: <defaults>
</compile_context>

<pallas_src>
import math

import jax
import jax.numpy as jnp
from jax.experimental import pallas as pl
from jax.experimental.pallas import tpu as pltpu

# ----------------------------- problem sizes --------------------------------
S = 8           # sequence length
B = 2           # batch
D = 32          # d_model
H = 4           # num heads
DH = D // H     # head dim
F = 64          # dim_feedforward
N = S * B       # tokens per call (rows of the 2-D working tile)
EPS = 1e-5      # LayerNorm eps (torch default)
SCALING = 1.0 / math.sqrt(DH)
_SQRT_2_OVER_PI = math.sqrt(2.0 / math.pi)

# ---------------------- packed parameter slab layout -------------------------
# One f32 array of shape (64, 224); a single HBM->VMEM DMA carries every weight.
SLAB_R = 64                 # rows (>= F for w2T)
SLAB_C = 4 * D + F + D      # 224 columns
C_QKV = 0                   # [0:D , 0:3D]        fused QKV weight^T (Q scaled)
C_WO = 3 * D                # [0:D , 3D:4D]       attention out-proj^T
C_W1 = 4 * D                # [0:D , 4D:4D+F]     FFN linear1^T
C_W2 = 4 * D + F            # [0:F , 4D+F:4D+F+D] FFN linear2^T
R_BQKV = 32                 # row 32: fused QKV bias (Q part scaled)
R_BIAS = 40                 # row 40: [bo | b1 | b2]
R_LN = 48                   # row 48: [g1 | be1 | g2 | be2]


def _gelu_tanh(x):
    # tanh approximation of erf-GELU; error << 2e-2 test tolerance, uses EUP tanh.
    return 0.5 * x * (1.0 + jnp.tanh(_SQRT_2_OVER_PI * (x + 0.044715 * x * x * x)))


def _layer_norm(x, gamma, beta):
    mean = jnp.mean(x, axis=-1, keepdims=True)
    cen = x - mean
    var = jnp.mean(cen * cen, axis=-1, keepdims=True)
    return cen * jax.lax.rsqrt(var + EPS) * gamma + beta


# ------------------------------- the kernel ---------------------------------
def encoder_layer_kernel(x_ref, w_ref, out_ref):
    x = x_ref[...]                                      # (N, D), rows in (seq, batch) order

    # ---- unpack the single parameter slab (static sub-window loads) ----
    wqkvT = w_ref[0:D, C_QKV:C_QKV + 3 * D]             # (D, 3D)
    woT = w_ref[0:D, C_WO:C_WO + D]                     # (D, D)
    w1T = w_ref[0:D, C_W1:C_W1 + F]                     # (D, F)
    w2T = w_ref[0:F, C_W2:C_W2 + D]                     # (F, D)
    bqkv = w_ref[R_BQKV:R_BQKV + 1, 0:3 * D]            # (1, 3D)
    bo = w_ref[R_BIAS:R_BIAS + 1, 0:D]
    b1 = w_ref[R_BIAS:R_BIAS + 1, D:D + F]
    b2 = w_ref[R_BIAS:R_BIAS + 1, D + F:2 * D + F]
    g1 = w_ref[R_LN:R_LN + 1, 0:D]
    be1 = w_ref[R_LN:R_LN + 1, D:2 * D]
    g2 = w_ref[R_LN:R_LN + 1, 2 * D:3 * D]
    be2 = w_ref[R_LN:R_LN + 1, 3 * D:4 * D]

    # ---- fused QKV projection (1/sqrt(DH) already folded into the Q block) ----
    qkv = jnp.dot(x, wqkvT, preferred_element_type=jnp.float32) + bqkv   # (N, 3D)

    # ---- additive mask: token t belongs to batch t % B; attend within batch only ----
    ri = jax.lax.broadcasted_iota(jnp.int32, (N, N), 0)
    rj = jax.lax.broadcasted_iota(jnp.int32, (N, N), 1)
    neg_mask = jnp.where((ri % B) == (rj % B), 0.0, -1e30).astype(jnp.float32)

    # ---- multi-head self-attention: one (N, N) 2-D score tile per head ----
    acc = None                                          # accumulates attn @ Wo^T, (N, D)
    for h in range(H):                                  # static unroll over heads
        qh = qkv[:, h * DH:(h + 1) * DH]                # (N, DH)
        kh = qkv[:, D + h * DH:D + (h + 1) * DH]
        vh = qkv[:, 2 * D + h * DH:2 * D + (h + 1) * DH]
        s = jax.lax.dot_general(qh, kh, (((1,), (1,)), ((), ())),
                                preferred_element_type=jnp.float32)      # (N, N)
        s = s + neg_mask
        s = s - jnp.max(s, axis=-1, keepdims=True)
        p = jnp.exp(s)
        p = p * pl.reciprocal(jnp.sum(p, axis=-1, keepdims=True), approx=True)
        oh = jnp.dot(p, vh, preferred_element_type=jnp.float32)          # (N, DH)
        c = jnp.dot(oh, woT[h * DH:(h + 1) * DH, :],
                    preferred_element_type=jnp.float32)                  # (N, D)
        acc = c if acc is None else acc + c
    attn = acc + bo

    # ---- residual + LayerNorm1 (dropout1 = identity in eval) ----
    y = _layer_norm(x + attn, g1, be1)

    # ---- feed-forward (dropout = identity in eval) ----
    h1 = jnp.dot(y, w1T, preferred_element_type=jnp.float32) + b1
    h2 = jnp.dot(_gelu_tanh(h1), w2T, preferred_element_type=jnp.float32) + b2

    # ---- residual + LayerNorm2 (dropout2 = identity in eval) ----
    out_ref[...] = _layer_norm(y + h2, g2, be2).astype(out_ref.dtype)


# ------------------------------- wrapper -------------------------------------
@jax.jit
def transformer_encoder_layer(src_sbd, slab):
    """src_sbd: (S, B, D) float32, PyTorch MultiheadAttention layout."""
    x = src_sbd.reshape(N, D)          # free row-major reshape, rows stay (seq, batch)
    out = pl.pallas_call(
        encoder_layer_kernel,
        out_shape=jax.ShapeDtypeStruct((N, D), jnp.float32),
        in_specs=[pl.BlockSpec(memory_space=pltpu.MemorySpace.VMEM),
                  pl.BlockSpec(memory_space=pltpu.MemorySpace.VMEM)],
        out_specs=pl.BlockSpec(memory_space=pltpu.MemorySpace.VMEM),
    )(x, slab)
    return out.reshape(S, B, D)        # free reshape back to (S, B, D)


# ------------------------- deterministic parameters ---------------------------
def make_params(key):
    ks = jax.random.split(key, 12)
    scale = 0.05
    in_proj_w = jax.random.normal(ks[0], (3 * D, D), jnp.float32) * scale
    in_proj_b = jax.random.normal(ks[1], (3 * D,), jnp.float32) * scale
    out_proj_w = jax.random.normal(ks[2], (D, D), jnp.float32) * scale
    out_proj_b = jax.random.normal(ks[3], (D,), jnp.float32) * scale
    w1 = jax.random.normal(ks[4], (F, D), jnp.float32) * scale
    b1 = jax.random.normal(ks[5], (F,), jnp.float32) * scale
    w2 = jax.random.normal(ks[6], (D, F), jnp.float32) * scale
    b2 = jax.random.normal(ks[7], (D,), jnp.float32) * scale
    g1 = 1.0 + 0.1 * jax.random.normal(ks[8], (D,), jnp.float32)
    be1 = 0.1 * jax.random.normal(ks[9], (D,), jnp.float32)
    g2 = 1.0 + 0.1 * jax.random.normal(ks[10], (D,), jnp.float32)
    be2 = 0.1 * jax.random.normal(ks[11], (D,), jnp.float32)

    wq, wk, wv = in_proj_w[:D], in_proj_w[D:2 * D], in_proj_w[2 * D:]
    bq, bk, bv = in_proj_b[:D], in_proj_b[D:2 * D], in_proj_b[2 * D:]
    return {
        "wqT": wq.T, "wkT": wk.T, "wvT": wv.T,
        "bq": bq, "bk": bk, "bv": bv,
        "woT": out_proj_w.T, "bo": out_proj_b,
        "g1": g1, "be1": be1,
        "w1T": w1.T, "b1": b1,
        "w2T": w2.T, "b2": b2,
        "g2": g2, "be2": be2,
    }


def pack_param_slab(p):
    """Fuse QKV (scale folded into Q) and pack all weights/biases into ONE slab."""
    wqkvT = jnp.concatenate([p["wqT"] * SCALING, p["wkT"], p["wvT"]], axis=1)   # (D, 3D)
    bqkv = jnp.concatenate([p["bq"] * SCALING, p["bk"], p["bv"]], axis=0)       # (3D,)
    slab = jnp.zeros((SLAB_R, SLAB_C), jnp.float32)
    slab = slab.at[0:D, C_QKV:C_QKV + 3 * D].set(wqkvT)
    slab = slab.at[0:D, C_WO:C_WO + D].set(p["woT"])
    slab = slab.at[0:D, C_W1:C_W1 + F].set(p["w1T"])
    slab = slab.at[0:F, C_W2:C_W2 + D].set(p["w2T"])
    slab = slab.at[R_BQKV, 0:3 * D].set(bqkv)
    slab = slab.at[R_BIAS, 0:D].set(p["bo"])
    slab = slab.at[R_BIAS, D:D + F].set(p["b1"])
    slab = slab.at[R_BIAS, D + F:2 * D + F].set(p["b2"])
    slab = slab.at[R_LN, 0:D].set(p["g1"])
    slab = slab.at[R_LN, D:2 * D].set(p["be1"])
    slab = slab.at[R_LN, 2 * D:3 * D].set(p["g2"])
    slab = slab.at[R_LN, 3 * D:4 * D].set(p["be2"])
    return slab


# ---------------------------- pure-JAX reference ------------------------------
def reference(src_sbd, p):
    x = jnp.transpose(src_sbd, (1, 0, 2))                         # (B, S, D)
    q = x @ p["wqT"] + p["bq"]
    k = x @ p["wkT"] + p["bk"]
    v = x @ p["wvT"] + p["bv"]

    def split(t):  # (B, S, D) -> (B, H, S, DH)
        return t.reshape(B, S, H, DH).transpose(0, 2, 1, 3)

    qh, kh, vh = split(q) * SCALING, split(k), split(v)
    s = jnp.einsum("bhqd,bhkd->bhqk", qh, kh)
    a = jax.nn.softmax(s, axis=-1)
    o = jnp.einsum("bhqk,bhkd->bhqd", a, vh).transpose(0, 2, 1, 3).reshape(B, S, D)
    attn_out = o @ p["woT"] + p["bo"]

    def ln(t, g, b):
        m = jnp.mean(t, axis=-1, keepdims=True)
        va = jnp.mean((t - m) ** 2, axis=-1, keepdims=True)
        return (t - m) / jnp.sqrt(va + EPS) * g + b

    y = ln(x + attn_out, p["g1"], p["be1"])
    hff = jax.nn.gelu(y @ p["w1T"] + p["b1"], approximate=False)   # exact erf GELU
    z = ln(y + hff @ p["w2T"] + p["b2"], p["g2"], p["be2"])
    return jnp.transpose(z, (1, 0, 2))                             # (S, B, D)


# --------------------------------- main ---------------------------------------
if __name__ == "__main__":
    key = jax.random.PRNGKey(0)
    k_src, k_par = jax.random.split(key)
    src = jax.random.normal(k_src, (S, B, D), jnp.float32)         # (S, B, D)
    params = make_params(k_par)
    slab = pack_param_slab(params)

    out = jax.block_until_ready(transformer_encoder_layer(src, slab))
    ref = jax.block_until_ready(reference(src, params))

    assert out.shape == (S, B, D)
    assert jnp.allclose(out, ref, atol=2e-2, rtol=2e-2), "mismatch vs reference"

    print("KERNEL_OK")
</pallas_src>

<mosaic_0001>
module attributes {stable_mosaic.version = 11 : i64} {
  func.func @encoder_layer_kernel(%arg0: memref<16x32xf32, #tpu.memory_space<vmem>>, %arg1: memref<64x224xf32, #tpu.memory_space<vmem>>, %arg2: memref<16x32xf32, #tpu.memory_space<vmem>>) attributes {dimension_semantics = [], scalar_prefetch = 0 : i64, scratch_operands = 0 : i64, tpu.core_type = #tpu.core_type<tc>} {
    %c0 = arith.constant 0 : index
    %c0_0 = arith.constant 0 : index
    %0 = vector.load %arg0[%c0, %c0_0] : memref<16x32xf32, #tpu.memory_space<vmem>>, vector<16x32xf32>
    %c0_1 = arith.constant 0 : index
    %c0_2 = arith.constant 0 : index
    %1 = vector.load %arg1[%c0_1, %c0_2] : memref<64x224xf32, #tpu.memory_space<vmem>>, vector<32x96xf32>
    %c0_3 = arith.constant 0 : index
    %c96 = arith.constant 96 : index
    %2 = vector.load %arg1[%c0_3, %c96] : memref<64x224xf32, #tpu.memory_space<vmem>>, vector<32x32xf32>
    %c0_4 = arith.constant 0 : index
    %c128 = arith.constant 128 : index
    %3 = vector.load %arg1[%c0_4, %c128] : memref<64x224xf32, #tpu.memory_space<vmem>>, vector<32x64xf32>
    %c0_5 = arith.constant 0 : index
    %c192 = arith.constant 192 : index
    %4 = vector.load %arg1[%c0_5, %c192] : memref<64x224xf32, #tpu.memory_space<vmem>>, vector<64x32xf32>
    %c32 = arith.constant 32 : index
    %c0_6 = arith.constant 0 : index
    %5 = vector.load %arg1[%c32, %c0_6] : memref<64x224xf32, #tpu.memory_space<vmem>>, vector<1x96xf32>
    %c40 = arith.constant 40 : index
    %c0_7 = arith.constant 0 : index
    %6 = vector.load %arg1[%c40, %c0_7] : memref<64x224xf32, #tpu.memory_space<vmem>>, vector<1x32xf32>
    %c40_8 = arith.constant 40 : index
    %c32_9 = arith.constant 32 : index
    %7 = vector.load %arg1[%c40_8, %c32_9] : memref<64x224xf32, #tpu.memory_space<vmem>>, vector<1x64xf32>
    %c40_10 = arith.constant 40 : index
    %c96_11 = arith.constant 96 : index
    %8 = vector.load %arg1[%c40_10, %c96_11] : memref<64x224xf32, #tpu.memory_space<vmem>>, vector<1x32xf32>
    %c48 = arith.constant 48 : index
    %c0_12 = arith.constant 0 : index
    %9 = vector.load %arg1[%c48, %c0_12] : memref<64x224xf32, #tpu.memory_space<vmem>>, vector<1x32xf32>
    %c48_13 = arith.constant 48 : index
    %c32_14 = arith.constant 32 : index
    %10 = vector.load %arg1[%c48_13, %c32_14] : memref<64x224xf32, #tpu.memory_space<vmem>>, vector<1x32xf32>
    %c48_15 = arith.constant 48 : index
    %c64 = arith.constant 64 : index
    %11 = vector.load %arg1[%c48_15, %c64] : memref<64x224xf32, #tpu.memory_space<vmem>>, vector<1x32xf32>
    %c48_16 = arith.constant 48 : index
    %c96_17 = arith.constant 96 : index
    %12 = vector.load %arg1[%c48_16, %c96_17] : memref<64x224xf32, #tpu.memory_space<vmem>>, vector<1x32xf32>
    %cst = arith.constant dense<0.000000e+00> : vector<16x96xf32>
    %13 = tpu.matmul %0, %1, %cst {dimension_numbers = #tpu.dot_dimension_numbers<[1], [0], [0], [1], [0, 0, 1, 1], [], []>} : vector<16x32xf32>, vector<32x96xf32>, vector<16x96xf32> -> vector<16x96xf32>
    %14 = vector.broadcast %5 : vector<1x96xf32> to vector<16x96xf32>
    %15 = arith.addf %13, %14 : vector<16x96xf32>
    %16 = tpu.iota {dimensions = array<i32: 0>} : vector<16x16xi32>
    %17 = tpu.iota {dimensions = array<i32: 1>} : vector<16x16xi32>
    %c2_i32 = arith.constant 2 : i32
    %c0_i32 = arith.constant 0 : i32
    %18 = arith.cmpi eq, %c2_i32, %c0_i32 : i32
    %c1_i32 = arith.constant 1 : i32
    %19 = arith.select %18, %c1_i32, %c2_i32 : i32
    %20 = vector.broadcast %19 : i32 to vector<16x16xi32>
    %21 = arith.remsi %16, %20 : vector<16x16xi32>
    %c0_i32_18 = arith.constant 0 : i32
    %22 = vector.broadcast %c0_i32_18 : i32 to vector<16x16xi32>
    %23 = arith.cmpi ne, %21, %22 : vector<16x16xi32>
    %c0_i32_19 = arith.constant 0 : i32
    %24 = vector.broadcast %c0_i32_19 : i32 to vector<16x16xi32>
    %25 = arith.cmpi slt, %21, %24 : vector<16x16xi32>
    %c0_i32_20 = arith.constant 0 : i32
    %26 = arith.cmpi slt, %19, %c0_i32_20 : i32
    %27 = vector.broadcast %26 : i1 to vector<16x16xi1>
    %28 = vector.broadcast %27 : vector<16x16xi1> to vector<16x16xi1>
    %29 = arith.xori %25, %28 : vector<16x16xi1>
    %30 = arith.andi %29, %23 : vector<16x16xi1>
    %31 = vector.broadcast %19 : i32 to vector<16x16xi32>
    %32 = arith.addi %21, %31 : vector<16x16xi32>
    %33 = arith.select %30, %32, %21 : vector<16x16xi1>, vector<16x16xi32>
    %c2_i32_21 = arith.constant 2 : i32
    %c0_i32_22 = arith.constant 0 : i32
    %34 = arith.cmpi eq, %c2_i32_21, %c0_i32_22 : i32
    %c1_i32_23 = arith.constant 1 : i32
    %35 = arith.select %34, %c1_i32_23, %c2_i32_21 : i32
    %36 = vector.broadcast %35 : i32 to vector<16x16xi32>
    %37 = arith.remsi %17, %36 : vector<16x16xi32>
    %c0_i32_24 = arith.constant 0 : i32
    %38 = vector.broadcast %c0_i32_24 : i32 to vector<16x16xi32>
    %39 = arith.cmpi ne, %37, %38 : vector<16x16xi32>
    %c0_i32_25 = arith.constant 0 : i32
    %40 = vector.broadcast %c0_i32_25 : i32 to vector<16x16xi32>
    %41 = arith.cmpi slt, %37, %40 : vector<16x16xi32>
    %c0_i32_26 = arith.constant 0 : i32
    %42 = arith.cmpi slt, %35, %c0_i32_26 : i32
    %43 = vector.broadcast %42 : i1 to vector<16x16xi1>
    %44 = vector.broadcast %43 : vector<16x16xi1> to vector<16x16xi1>
    %45 = arith.xori %41, %44 : vector<16x16xi1>
    %46 = arith.andi %45, %39 : vector<16x16xi1>
    %47 = vector.broadcast %35 : i32 to vector<16x16xi32>
    %48 = arith.addi %37, %47 : vector<16x16xi32>
    %49 = arith.select %46, %48, %37 : vector<16x16xi1>, vector<16x16xi32>
    %50 = arith.cmpi eq, %33, %49 : vector<16x16xi32>
    %cst_27 = arith.constant 0.000000e+00 : f32
    %cst_28 = arith.constant -1.000000e+30 : f32
    %51 = vector.broadcast %cst_27 : f32 to vector<16x16xf32>
    %52 = vector.broadcast %cst_28 : f32 to vector<16x16xf32>
    %53 = arith.select %50, %51, %52 : vector<16x16xi1>, vector<16x16xf32>
    %54 = vector.extract_strided_slice %15 {offsets = [0, 0], sizes = [16, 8], strides = [1, 1]} : vector<16x96xf32> to vector<16x8xf32>
    %55 = vector.extract_strided_slice %15 {offsets = [0, 32], sizes = [16, 8], strides = [1, 1]} : vector<16x96xf32> to vector<16x8xf32>
    %56 = vector.extract_strided_slice %15 {offsets = [0, 64], sizes = [16, 8], strides = [1, 1]} : vector<16x96xf32> to vector<16x8xf32>
    %cst_29 = arith.constant dense<0.000000e+00> : vector<16x16xf32>
    %57 = tpu.matmul %54, %55, %cst_29 {dimension_numbers = #tpu.dot_dimension_numbers<[1], [1], [0], [0], [0, 0, 1, 0], [], []>} : vector<16x8xf32>, vector<16x8xf32>, vector<16x16xf32> -> vector<16x16xf32>
    %58 = arith.addf %57, %53 : vector<16x16xf32>
    %cst_30 = arith.constant dense<0xFF800000> : vector<16xf32>
    %59 = vector.multi_reduction <maximumf>, %58, %cst_30 [1] : vector<16x16xf32> to vector<16xf32>
    %60 = vector.shape_cast %59 : vector<16xf32> to vector<16x1xf32>
    %61 = vector.broadcast %60 : vector<16x1xf32> to vector<16x16xf32>
    %62 = arith.subf %58, %61 : vector<16x16xf32>
    %63 = math.exp %62 : vector<16x16xf32>
    %cst_31 = arith.constant dense<0.000000e+00> : vector<16xf32>
    %64 = vector.multi_reduction <add>, %63, %cst_31 [1] : vector<16x16xf32> to vector<16xf32>
    %65 = vector.shape_cast %64 : vector<16xf32> to vector<16x1xf32>
    %66 = tpu.reciprocal %65 {approx = true} : vector<16x1xf32> -> vector<16x1xf32>
    %67 = vector.broadcast %66 : vector<16x1xf32> to vector<16x16xf32>
    %68 = arith.mulf %63, %67 : vector<16x16xf32>
    %cst_32 = arith.constant dense<0.000000e+00> : vector<16x8xf32>
    %69 = tpu.matmul %68, %56, %cst_32 {dimension_numbers = #tpu.dot_dimension_numbers<[1], [0], [0], [1], [0, 0, 1, 1], [], []>} : vector<16x16xf32>, vector<16x8xf32>, vector<16x8xf32> -> vector<16x8xf32>
    %70 = vector.extract_strided_slice %2 {offsets = [0, 0], sizes = [8, 32], strides = [1, 1]} : vector<32x32xf32> to vector<8x32xf32>
    %cst_33 = arith.constant dense<0.000000e+00> : vector<16x32xf32>
    %71 = tpu.matmul %69, %70, %cst_33 {dimension_numbers = #tpu.dot_dimension_numbers<[1], [0], [0], [1], [0, 0, 1, 1], [], []>} : vector<16x8xf32>, vector<8x32xf32>, vector<16x32xf32> -> vector<16x32xf32>
    %72 = vector.extract_strided_slice %15 {offsets = [0, 8], sizes = [16, 8], strides = [1, 1]} : vector<16x96xf32> to vector<16x8xf32>
    %73 = vector.extract_strided_slice %15 {offsets = [0, 40], sizes = [16, 8], strides = [1, 1]} : vector<16x96xf32> to vector<16x8xf32>
    %74 = vector.extract_strided_slice %15 {offsets = [0, 72], sizes = [16, 8], strides = [1, 1]} : vector<16x96xf32> to vector<16x8xf32>
    %cst_34 = arith.constant dense<0.000000e+00> : vector<16x16xf32>
    %75 = tpu.matmul %72, %73, %cst_34 {dimension_numbers = #tpu.dot_dimension_numbers<[1], [1], [0], [0], [0, 0, 1, 0], [], []>} : vector<16x8xf32>, vector<16x8xf32>, vector<16x16xf32> -> vector<16x16xf32>
    %76 = arith.addf %75, %53 : vector<16x16xf32>
    %cst_35 = arith.constant dense<0xFF800000> : vector<16xf32>
    %77 = vector.multi_reduction <maximumf>, %76, %cst_35 [1] : vector<16x16xf32> to vector<16xf32>
    %78 = vector.shape_cast %77 : vector<16xf32> to vector<16x1xf32>
    %79 = vector.broadcast %78 : vector<16x1xf32> to vector<16x16xf32>
    %80 = arith.subf %76, %79 : vector<16x16xf32>
    %81 = math.exp %80 : vector<16x16xf32>
    %cst_36 = arith.constant dense<0.000000e+00> : vector<16xf32>
    %82 = vector.multi_reduction <add>, %81, %cst_36 [1] : vector<16x16xf32> to vector<16xf32>
    %83 = vector.shape_cast %82 : vector<16xf32> to vector<16x1xf32>
    %84 = tpu.reciprocal %83 {approx = true} : vector<16x1xf32> -> vector<16x1xf32>
    %85 = vector.broadcast %84 : vector<16x1xf32> to vector<16x16xf32>
    %86 = arith.mulf %81, %85 : vector<16x16xf32>
    %cst_37 = arith.constant dense<0.000000e+00> : vector<16x8xf32>
    %87 = tpu.matmul %86, %74, %cst_37 {dimension_numbers = #tpu.dot_dimension_numbers<[1], [0], [0], [1], [0, 0, 1, 1], [], []>} : vector<16x16xf32>, vector<16x8xf32>, vector<16x8xf32> -> vector<16x8xf32>
    %88 = vector.extract_strided_slice %2 {offsets = [8, 0], sizes = [8, 32], strides = [1, 1]} : vector<32x32xf32> to vector<8x32xf32>
    %cst_38 = arith.constant dense<0.000000e+00> : vector<16x32xf32>
    %89 = tpu.matmul %87, %88, %cst_38 {dimension_numbers = #tpu.dot_dimension_numbers<[1], [0], [0], [1], [0, 0, 1, 1], [], []>} : vector<16x8xf32>, vector<8x32xf32>, vector<16x32xf32> -> vector<16x32xf32>
    %90 = arith.addf %71, %89 : vector<16x32xf32>
    %91 = vector.extract_strided_slice %15 {offsets = [0, 16], sizes = [16, 8], strides = [1, 1]} : vector<16x96xf32> to vector<16x8xf32>
    %92 = vector.extract_strided_slice %15 {offsets = [0, 48], sizes = [16, 8], strides = [1, 1]} : vector<16x96xf32> to vector<16x8xf32>
    %93 = vector.extract_strided_slice %15 {offsets = [0, 80], sizes = [16, 8], strides = [1, 1]} : vector<16x96xf32> to vector<16x8xf32>
    %cst_39 = arith.constant dense<0.000000e+00> : vector<16x16xf32>
    %94 = tpu.matmul %91, %92, %cst_39 {dimension_numbers = #tpu.dot_dimension_numbers<[1], [1], [0], [0], [0, 0, 1, 0], [], []>} : vector<16x8xf32>, vector<16x8xf32>, vector<16x16xf32> -> vector<16x16xf32>
    %95 = arith.addf %94, %53 : vector<16x16xf32>
    %cst_40 = arith.constant dense<0xFF800000> : vector<16xf32>
    %96 = vector.multi_reduction <maximumf>, %95, %cst_40 [1] : vector<16x16xf32> to vector<16xf32>
    %97 = vector.shape_cast %96 : vector<16xf32> to vector<16x1xf32>
    %98 = vector.broadcast %97 : vector<16x1xf32> to vector<16x16xf32>
    %99 = arith.subf %95, %98 : vector<16x16xf32>
    %100 = math.exp %99 : vector<16x16xf32>
    %cst_41 = arith.constant dense<0.000000e+00> : vector<16xf32>
    %101 = vector.multi_reduction <add>, %100, %cst_41 [1] : vector<16x16xf32> to vector<16xf32>
    %102 = vector.shape_cast %101 : vector<16xf32> to vector<16x1xf32>
    %103 = tpu.reciprocal %102 {approx = true} : vector<16x1xf32> -> vector<16x1xf32>
    %104 = vector.broadcast %103 : vector<16x1xf32> to vector<16x16xf32>
    %105 = arith.mulf %100, %104 : vector<16x16xf32>
    %cst_42 = arith.constant dense<0.000000e+00> : vector<16x8xf32>
    %106 = tpu.matmul %105, %93, %cst_42 {dimension_numbers = #tpu.dot_dimension_numbers<[1], [0], [0], [1], [0, 0, 1, 1], [], []>} : vector<16x16xf32>, vector<16x8xf32>, vector<16x8xf32> -> vector<16x8xf32>
    %107 = vector.extract_strided_slice %2 {offsets = [16, 0], sizes = [8, 32], strides = [1, 1]} : vector<32x32xf32> to vector<8x32xf32>
    %cst_43 = arith.constant dense<0.000000e+00> : vector<16x32xf32>
    %108 = tpu.matmul %106, %107, %cst_43 {dimension_numbers = #tpu.dot_dimension_numbers<[1], [0], [0], [1], [0, 0, 1, 1], [], []>} : vector<16x8xf32>, vector<8x32xf32>, vector<16x32xf32> -> vector<16x32xf32>
    %109 = arith.addf %90, %108 : vector<16x32xf32>
    %110 = vector.extract_strided_slice %15 {offsets = [0, 24], sizes = [16, 8], strides = [1, 1]} : vector<16x96xf32> to vector<16x8xf32>
    %111 = vector.extract_strided_slice %15 {offsets = [0, 56], sizes = [16, 8], strides = [1, 1]} : vector<16x96xf32> to vector<16x8xf32>
    %112 = vector.extract_strided_slice %15 {offsets = [0, 88], sizes = [16, 8], strides = [1, 1]} : vector<16x96xf32> to vector<16x8xf32>
    %cst_44 = arith.constant dense<0.000000e+00> : vector<16x16xf32>
    %113 = tpu.matmul %110, %111, %cst_44 {dimension_numbers = #tpu.dot_dimension_numbers<[1], [1], [0], [0], [0, 0, 1, 0], [], []>} : vector<16x8xf32>, vector<16x8xf32>, vector<16x16xf32> -> vector<16x16xf32>
    %114 = arith.addf %113, %53 : vector<16x16xf32>
    %cst_45 = arith.constant dense<0xFF800000> : vector<16xf32>
    %115 = vector.multi_reduction <maximumf>, %114, %cst_45 [1] : vector<16x16xf32> to vector<16xf32>
    %116 = vector.shape_cast %115 : vector<16xf32> to vector<16x1xf32>
    %117 = vector.broadcast %116 : vector<16x1xf32> to vector<16x16xf32>
    %118 = arith.subf %114, %117 : vector<16x16xf32>
    %119 = math.exp %118 : vector<16x16xf32>
    %cst_46 = arith.constant dense<0.000000e+00> : vector<16xf32>
    %120 = vector.multi_reduction <add>, %119, %cst_46 [1] : vector<16x16xf32> to vector<16xf32>
    %121 = vector.shape_cast %120 : vector<16xf32> to vector<16x1xf32>
    %122 = tpu.reciprocal %121 {approx = true} : vector<16x1xf32> -> vector<16x1xf32>
    %123 = vector.broadcast %122 : vector<16x1xf32> to vector<16x16xf32>
    %124 = arith.mulf %119, %123 : vector<16x16xf32>
    %cst_47 = arith.constant dense<0.000000e+00> : vector<16x8xf32>
    %125 = tpu.matmul %124, %112, %cst_47 {dimension_numbers = #tpu.dot_dimension_numbers<[1], [0], [0], [1], [0, 0, 1, 1], [], []>} : vector<16x16xf32>, vector<16x8xf32>, vector<16x8xf32> -> vector<16x8xf32>
    %126 = vector.extract_strided_slice %2 {offsets = [24, 0], sizes = [8, 32], strides = [1, 1]} : vector<32x32xf32> to vector<8x32xf32>
    %cst_48 = arith.constant dense<0.000000e+00> : vector<16x32xf32>
    %127 = tpu.matmul %125, %126, %cst_48 {dimension_numbers = #tpu.dot_dimension_numbers<[1], [0], [0], [1], [0, 0, 1, 1], [], []>} : vector<16x8xf32>, vector<8x32xf32>, vector<16x32xf32> -> vector<16x32xf32>
    %128 = arith.addf %109, %127 : vector<16x32xf32>
    %129 = vector.broadcast %6 : vector<1x32xf32> to vector<16x32xf32>
    %130 = arith.addf %128, %129 : vector<16x32xf32>
    %131 = arith.addf %0, %130 : vector<16x32xf32>
    %cst_49 = arith.constant dense<0.000000e+00> : vector<16xf32>
    %132 = vector.multi_reduction <add>, %131, %cst_49 [1] : vector<16x32xf32> to vector<16xf32>
    %133 = vector.shape_cast %132 : vector<16xf32> to vector<16x1xf32>
    %cst_50 = arith.constant 3.200000e+01 : f32
    %134 = vector.broadcast %cst_50 : f32 to vector<16x1xf32>
    %135 = arith.divf %133, %134 : vector<16x1xf32>
    %136 = vector.broadcast %135 : vector<16x1xf32> to vector<16x32xf32>
    %137 = arith.subf %131, %136 : vector<16x32xf32>
    %138 = arith.mulf %137, %137 : vector<16x32xf32>
    %cst_51 = arith.constant dense<0.000000e+00> : vector<16xf32>
    %139 = vector.multi_reduction <add>, %138, %cst_51 [1] : vector<16x32xf32> to vector<16xf32>
    %140 = vector.shape_cast %139 : vector<16xf32> to vector<16x1xf32>
    %cst_52 = arith.constant 3.200000e+01 : f32
    %141 = vector.broadcast %cst_52 : f32 to vector<16x1xf32>
    %142 = arith.divf %140, %141 : vector<16x1xf32>
    %cst_53 = arith.constant 9.99999974E-6 : f32
    %143 = vector.broadcast %cst_53 : f32 to vector<16x1xf32>
    %144 = arith.addf %142, %143 : vector<16x1xf32>
    %145 = math.rsqrt %144 : vector<16x1xf32>
    %146 = vector.broadcast %145 : vector<16x1xf32> to vector<16x32xf32>
    %147 = arith.mulf %137, %146 : vector<16x32xf32>
    %148 = vector.broadcast %9 : vector<1x32xf32> to vector<16x32xf32>
    %149 = arith.mulf %147, %148 : vector<16x32xf32>
    %150 = vector.broadcast %10 : vector<1x32xf32> to vector<16x32xf32>
    %151 = arith.addf %149, %150 : vector<16x32xf32>
    %cst_54 = arith.constant dense<0.000000e+00> : vector<16x64xf32>
    %152 = tpu.matmul %151, %3, %cst_54 {dimension_numbers = #tpu.dot_dimension_numbers<[1], [0], [0], [1], [0, 0, 1, 1], [], []>} : vector<16x32xf32>, vector<32x64xf32>, vector<16x64xf32> -> vector<16x64xf32>
    %153 = vector.broadcast %7 : vector<1x64xf32> to vector<16x64xf32>
    %154 = arith.addf %152, %153 : vector<16x64xf32>
    %cst_55 = arith.constant 5.000000e-01 : f32
    %155 = vector.broadcast %cst_55 : f32 to vector<16x64xf32>
    %156 = arith.mulf %155, %154 : vector<16x64xf32>
    %cst_56 = arith.constant 4.471500e-02 : f32
    %157 = vector.broadcast %cst_56 : f32 to vector<16x64xf32>
    %158 = arith.mulf %157, %154 : vector<16x64xf32>
    %159 = arith.mulf %158, %154 : vector<16x64xf32>
    %160 = arith.mulf %159, %154 : vector<16x64xf32>
    %161 = arith.addf %154, %160 : vector<16x64xf32>
    %cst_57 = arith.constant 0.797884583 : f32
    %162 = vector.broadcast %cst_57 : f32 to vector<16x64xf32>
    %163 = arith.mulf %162, %161 : vector<16x64xf32>
    %164 = math.tanh %163 : vector<16x64xf32>
    %cst_58 = arith.constant 1.000000e+00 : f32
    %165 = vector.broadcast %cst_58 : f32 to vector<16x64xf32>
    %166 = arith.addf %165, %164 : vector<16x64xf32>
    %167 = arith.mulf %156, %166 : vector<16x64xf32>
    %cst_59 = arith.constant dense<0.000000e+00> : vector<16x32xf32>
    %168 = tpu.matmul %167, %4, %cst_59 {dimension_numbers = #tpu.dot_dimension_numbers<[1], [0], [0], [1], [0, 0, 1, 1], [], []>} : vector<16x64xf32>, vector<64x32xf32>, vector<16x32xf32> -> vector<16x32xf32>
    %169 = vector.broadcast %8 : vector<1x32xf32> to vector<16x32xf32>
    %170 = arith.addf %168, %169 : vector<16x32xf32>
    %171 = arith.addf %151, %170 : vector<16x32xf32>
    %cst_60 = arith.constant dense<0.000000e+00> : vector<16xf32>
    %172 = vector.multi_reduction <add>, %171, %cst_60 [1] : vector<16x32xf32> to vector<16xf32>
    %173 = vector.shape_cast %172 : vector<16xf32> to vector<16x1xf32>
    %cst_61 = arith.constant 3.200000e+01 : f32
    %174 = vector.broadcast %cst_61 : f32 to vector<16x1xf32>
    %175 = arith.divf %173, %174 : vector<16x1xf32>
    %176 = vector.broadcast %175 : vector<16x1xf32> to vector<16x32xf32>
    %177 = arith.subf %171, %176 : vector<16x32xf32>
    %178 = arith.mulf %177, %177 : vector<16x32xf32>
    %cst_62 = arith.constant dense<0.000000e+00> : vector<16xf32>
    %179 = vector.multi_reduction <add>, %178, %cst_62 [1] : vector<16x32xf32> to vector<16xf32>
    %180 = vector.shape_cast %179 : vector<16xf32> to vector<16x1xf32>
    %cst_63 = arith.constant 3.200000e+01 : f32
    %181 = vector.broadcast %cst_63 : f32 to vector<16x1xf32>
    %182 = arith.divf %180, %181 : vector<16x1xf32>
    %cst_64 = arith.constant 9.99999974E-6 : f32
    %183 = vector.broadcast %cst_64 : f32 to vector<16x1xf32>
    %184 = arith.addf %182, %183 : vector<16x1xf32>
    %185 = math.rsqrt %184 : vector<16x1xf32>
    %186 = vector.broadcast %185 : vector<16x1xf32> to vector<16x32xf32>
    %187 = arith.mulf %177, %186 : vector<16x32xf32>
    %188 = vector.broadcast %11 : vector<1x32xf32> to vector<16x32xf32>
    %189 = arith.mulf %187, %188 : vector<16x32xf32>
    %190 = vector.broadcast %12 : vector<1x32xf32> to vector<16x32xf32>
    %191 = arith.addf %189, %190 : vector<16x32xf32>
    %c0_65 = arith.constant 0 : index
    %c0_66 = arith.constant 0 : index
    %192 = vector.load %arg2[%c0_65, %c0_66] : memref<16x32xf32, #tpu.memory_space<vmem>>, vector<16x32xf32>
    tpu.vector_store %arg2[%c0_65, %c0_66], %191 {strides = array<i32>} : memref<16x32xf32, #tpu.memory_space<vmem>>, vector<16x32xf32>,
    return
  }
}

</mosaic_0001>

<llo_original>
// kernel: transformer_encoder_layer.1
$region0: #{transformer_encoder_layer.1}
  #allocation0 [shape = 'u32[]', space=smem, size = 0x4, offset = 0x4, fixed_abs, tag = 'smem constant byte address 0x4 - core index']
  #allocation1 [shape = 'u32[144,128]{1,0:T(1,128)}', space=vmem, size = 0x12000, scoped, tag = 'internal scratch']
  %s0 = inlined_call_operand.hbm [shape: f32[16,32], index: 0, kind: input, shape index: {}]
  %s1 = inlined_call_operand.hbm [shape: f32[64,224], index: 1, kind: input, shape index: {}]
  %s2 = inlined_call_operand.hbm [shape: f32[16,32], index: 2, kind: output, shape index: {}]
  %s3 = sld [smem:[#allocation0]]
  $region26: #{transformer_encoder_layer.1} parent=0
    _
  %s5 = ssub.s32 1, %s3
  %s6 = scalar_select 0, %s5, %s3
  $region1: #{transformer_encoder_layer.1} parent=0
    #allocation2 [shape = 'u8[8192]{0}', space=vmem, size = 0x2000, scoped, tag = 'input window, operand 0, single buffered']
    #allocation3 [shape = 's32[1]{0}', space=sflag, size = 0x4, scoped, tag = 'scoped memory for transformer_encoder_layer.1']
    #allocation4 [shape = 's32[1]{0}', space=sflag, size = 0x4, scoped, tag = 'scoped memory for transformer_encoder_layer.1']
    #allocation5 [shape = 'u8[65536]{0}', space=vmem, size = 0x10000, scoped, tag = 'input window, operand 1, single buffered']
    #allocation6 [shape = 's32[1]{0}', space=sflag, size = 0x4, scoped, tag = 'scoped memory for transformer_encoder_layer.1']
    #allocation7 [shape = 'u8[8192]{0}', space=vmem, size = 0x2000, scoped, tag = 'output window, operand 0, single buffered']
    %7 = vsyncpa [#allocation3], 0
    %8 = vsyncpa [#allocation6], 0
    %9 = vsyncpa [#allocation4], 0
    // Predicated region
    $region2: #{transformer_encoder_layer.1} parent=1 // pred_check
      _
    $region3: #{transformer_encoder_layer.1} parent=1 // pred_check_branch
      %11 = sbr.rel (0) target = $region5
    $region4: #{transformer_encoder_layer.1} parent=1 // pred_region
      %s13 = ssub.s32 256, 256
      %14 = vsyncadd [#allocation3], %s13
      %s15 = sshll.u32 [#allocation2], 4
      %s16 = int_to_ptr.vmem [resolvable:$true] %s15
      %21 = dma.hbm_to_vmem [thread:$0]  %s0, 256, %s16, [#allocation3], 128, 128, 8
    $region5: #{transformer_encoder_layer.1} parent=1 // pred_fallthru
      _
    // Predicated region
    $region6: #{transformer_encoder_layer.1} parent=1 // pred_check
      _
    $region7: #{transformer_encoder_layer.1} parent=1 // pred_check_branch
      %23 = sbr.rel (0) target = $region9
    $region8: #{transformer_encoder_layer.1} parent=1 // pred_region
      %s25 = ssub.s32 2048, 2048
      %26 = vsyncadd [#allocation6], %s25
      %s27 = sshll.u32 [#allocation5], 4
      %s28 = int_to_ptr.vmem [resolvable:$true] %s27
      %33 = dma.hbm_to_vmem [thread:$0]  %s1, 2048, %s28, [#allocation6], 256, 256, 16
    $region9: #{transformer_encoder_layer.1} parent=1 // pred_fallthru
      _
    // Predicated region
    $region10: #{transformer_encoder_layer.1} parent=1 // pred_check
      _
    $region11: #{transformer_encoder_layer.1} parent=1 // pred_check_branch
      %35 = sbr.rel (0) target = $region13
    $region12: #{transformer_encoder_layer.1} parent=1 // pred_region
      %36 = dma.done [#allocation3], 256
    $region13: #{transformer_encoder_layer.1} parent=1 // pred_fallthru
      _
    // Predicated region
    $region14: #{transformer_encoder_layer.1} parent=1 // pred_check
      _
    $region15: #{transformer_encoder_layer.1} parent=1 // pred_check_branch
      %38 = sbr.rel (0) target = $region17
    $region16: #{transformer_encoder_layer.1} parent=1 // pred_region
      %39 = dma.done [#allocation6], 2048
    $region17: #{transformer_encoder_layer.1} parent=1 // pred_fallthru
      _
    %v40 = vld [vmem:[#allocation2] sm:$0xff]
    %v41 = vld [vmem:[#allocation2 + $0x8] sm:$0xff]
    %v42 = vld [vmem:[#allocation5] sm:$0xff]
    %v43 = vld [vmem:[#allocation5 + $0x10] sm:$0xff]
    %v44 = vld [vmem:[#allocation5 + $0x20] sm:$0xff]
    %v45 = vld [vmem:[#allocation5 + $0x30] sm:$0xff]
    %v46 = vld [vmem:[#allocation5 + $0x8] sm:$0xff]
    %v47 = vld [vmem:[#allocation5 + $0x18] sm:$0xff]
    %v48 = vld [vmem:[#allocation5 + $0x28] sm:$0xff]
    %v49 = vld [vmem:[#allocation5 + $0x38] sm:$0xff]
    %v50 = vld [vmem:[#allocation5 + $0x48] sm:$0xff]
    %v51 = vld [vmem:[#allocation5 + $0x58] sm:$0xff]
    %v52 = vld [vmem:[#allocation5 + $0x68] sm:$0xff]
    %v53 = vld [vmem:[#allocation5 + $0x78] sm:$0xff]
    %v54 = vld [vmem:[#allocation5 + $0x40] ss:$0 sm:$0xff]
    %v55 = vld [vmem:[#allocation5 + $0x50] ss:$0 sm:$0xff]
    %v56 = vld [vmem:[#allocation5 + $0x60] ss:$0 sm:$0xff]
    %vm57 = vcmask 261120
    %v59 = vsel %vm57, %v40, 0
    %v62 = vsel %vm57, %v41, 0
    %64 = vmatprep.subr.mxu0 0.0
    %65 = vmatpush1.msra.mxu0 %v42
    %66 = vmatprep.subr.mxu0 0.0
    %67 = vmatpush1.msra.mxu0 %v43
    %68 = vmatprep.subr.mxu0 0.0
    %69 = vmatpush1.msra.mxu0 %v44
    %70 = vmatprep.subr.mxu0 0.0
    %71 = vmatpush1.msra.mxu0 %v45
    %72 = vmatprep.subr.mxu0 0.0
    %73 = vmatpush1.msra.mxu0 0.0
    %74 = vmatprep.subr.mxu0 0.0
    %75 = vmatpush1.msra.mxu0 0.0
    %76 = vmatprep.subr.mxu0 0.0
    %77 = vmatpush1.msra.mxu0 0.0
    %78 = vmatprep.subr.mxu0 0.0
    %79 = vmatpush1.msra.mxu0 0.0
    %80 = vmatprep.subr.mxu0 0.0
    %81 = vmatpush1.msra.mxu0 0.0
    %82 = vmatprep.subr.mxu0 0.0
    %83 = vmatpush1.msra.mxu0 0.0
    %84 = vmatprep.subr.mxu0 0.0
    %85 = vmatpush1.msra.mxu0 0.0
    %86 = vmatprep.subr.mxu0 0.0
    %87 = vmatpush1.msra.mxu0 0.0
    %88 = vmatprep.subr.mxu0 0.0
    %89 = vmatpush1.msra.mxu0 0.0
    %90 = vmatprep.subr.mxu0 0.0
    %91 = vmatpush1.msra.mxu0 0.0
    %92 = vmatprep.subr.mxu0 0.0
    %93 = vmatpush1.msra.mxu0 0.0
    %94 = vmatprep.subr.mxu0 0.0
    %95 = vmatpush1.msra.mxu0 0.0
    %96 = vmatprep.subr.mxu0 0.0
    %97 = vmatpush1.msra.mxu0 0.0
    %98 = vmatprep.subr.mxu0 0.0
    %99 = vmatpush1.msra.mxu0 0.0
    %100 = vmatprep.subr.mxu0 0.0
    %101 = vmatpush1.msra.mxu0 0.0
    %102 = vmatprep.subr.mxu0 0.0
    %103 = vmatpush1.msra.mxu0 0.0
    %104 = vmatprep.subr.mxu0 0.0
    %105 = vmatpush1.msra.mxu0 0.0
    %106 = vmatprep.subr.mxu0 0.0
    %107 = vmatpush1.msra.mxu0 0.0
    %108 = vmatprep.subr.mxu0 0.0
    %109 = vmatpush1.msra.mxu0 0.0
    %110 = vmatprep.subr.mxu0 0.0
    %111 = vmatpush1.msra.mxu0 0.0
    %112 = vmatprep.subr.mxu0 0.0
    %113 = vmatpush1.msra.mxu0 0.0
    %114 = vmatprep.subr.mxu0 0.0
    %115 = vmatpush1.msra.mxu0 0.0
    %116 = vmatprep.subr.mxu0 0.0
    %117 = vmatpush1.msra.mxu0 0.0
    %118 = vmatprep.subr.mxu0 0.0
    %119 = vmatpush1.msra.mxu0 0.0
    %120 = vmatprep.subr.mxu0 0.0
    %121 = vmatpush1.msra.mxu0 0.0
    %122 = vmatprep.subr.mxu0 0.0
    %123 = vmatpush1.msra.mxu0 0.0
    %124 = vmatprep.subr.mxu0 0.0
    %125 = vmatpush1.msra.mxu0 0.0
    %126 = vmatprep.subr.mxu0 0.0
    %127 = vmatpush1.msra.mxu0 0.0
    %128 = vmatprep.mubr.f32.mxu0 0.0
    %129 = vmatmul.mubr.f32.gmra.mrb[0].mxu0 %v59
    %v130 = vpop.f32.mrb[0].mxu0
    %v131 = vadd.f32 %v54, %v130
    %v132 = vpop.f32.mrb[0].mxu0
    %133 = vmatprep.mubr.f32.mxu0 0.0
    %134 = vmatmul.mubr.f32.gmra.mrb[0].mxu0 %v62
    %v135 = vpop.f32.mrb[0].mxu0
    %v136 = vadd.f32 %v54, %v135
    %v137 = vpop.f32.mrb[0].mxu0
    %138 = vdwg.mxu0
    %v139 = vlaneseq
    %v140 = vshrl.u32 %v139, 7
    %v141 = vadd.s32 %v140, 8
    %v142 = vlaneseq
    %v143 = vand.u32 %v142, 127
    %vm144 = vcmp.lt.s32.totalorder %v140, 0
    %v145 = vsub.s32 0, %v140
    %v146 = vsel %vm144, %v145, %v140
    %v147 = vshrl.u32 %v146, 1
    %v148 = vand.u32 %v146, 1
    %v149 = vsub.s32 0, %v148
    %v150 = vsel %vm144, %v149, %v148
    %vm151 = vcmp.lt.s32.totalorder %v141, 0
    %v152 = vsub.s32 0, %v141
    %v153 = vsel %vm151, %v152, %v141
    %v154 = vshrl.u32 %v153, 1
    %v155 = vand.u32 %v153, 1
    %v156 = vsub.s32 0, %v155
    %v157 = vsel %vm151, %v156, %v155
    %vm158 = vcmp.ne.s32.totalorder %v150, 0
    %vm159 = vcmp.ne.s32.totalorder %v157, 0
    %vm160 = vcmp.lt.s32.totalorder %v150, 0
    %vm161 = vcmp.lt.s32.totalorder %v157, 0
    %vm162 = vmand %vm160, %vm158
    %vm163 = vmand %vm161, %vm159
    %v164 = vadd.s32 %v150, 2
    %v165 = vadd.s32 %v157, 2
    %v166 = vsel %vm162, %v164, %v150
    %v167 = vsel %vm163, %v165, %v157
    %vm168 = vcmp.lt.s32.totalorder %v143, 0
    %v169 = vsub.s32 0, %v143
    %v170 = vsel %vm168, %v169, %v143
    %v171 = vshrl.u32 %v170, 1
    %v172 = vand.u32 %v170, 1
    %v173 = vsub.s32 0, %v172
    %v174 = vsel %vm168, %v173, %v172
    %vm175 = vcmp.ne.s32.totalorder %v174, 0
    %vm176 = vcmp.lt.s32.totalorder %v174, 0
    %vm177 = vmand %vm176, %vm175
    %v178 = vadd.s32 %v174, 2
    %v179 = vsel %vm177, %v178, %v174
    %vm180 = vcmp.eq.s32.totalorder %v166, %v179
    %vm181 = vcmp.eq.s32.totalorder %v167, %v179
    %v182 = vsel %vm180, 0.0, -1e+30
    %v183 = vsel %vm181, 0.0, -1e+30
    %186 = vrot.lane.b32.xlu0 %v131, 96
    %v187 = vpop.permute.xlu0 %186
    %188 = vrot.lane.b32.xlu0 %v136, 96
    %v189 = vpop.permute.xlu0 %188
    %vm190 = vcmask 64512
    %v191 = vsel %vm190, %v131, 0
    %v193 = vsel %vm190, %v136, 0
    %v195 = vsel %vm190, %v187, 0
    %v197 = vsel %vm190, %v189, 0
    %199 = vmatprep.subr.mxu0 0.0
    %200 = vmatpush1.xpose.msra.mxu0 %v195
    %201 = vmatprep.subr.mxu0 0.0
    %202 = vmatpush1.xpose.msra.mxu0 %v197
    %203 = vmatprep.subr.mxu0 0.0
    %204 = vmatpush1.xpose.msra.mxu0 0.0
    %205 = vmatprep.subr.mxu0 0.0
    %206 = vmatpush1.xpose.msra.mxu0 0.0
    %207 = vmatprep.subr.mxu0 0.0
    %208 = vmatpush1.xpose.msra.mxu0 0.0
    %209 = vmatprep.subr.mxu0 0.0
    %210 = vmatpush1.xpose.msra.mxu0 0.0
    %211 = vmatprep.subr.mxu0 0.0
    %212 = vmatpush1.xpose.msra.mxu0 0.0
    %213 = vmatprep.subr.mxu0 0.0
    %214 = vmatpush1.xpose.msra.mxu0 0.0
    %215 = vmatprep.subr.mxu0 0.0
    %216 = vmatpush1.xpose.msra.mxu0 0.0
    %217 = vmatprep.subr.mxu0 0.0
    %218 = vmatpush1.xpose.msra.mxu0 0.0
    %219 = vmatprep.subr.mxu0 0.0
    %220 = vmatpush1.xpose.msra.mxu0 0.0
    %221 = vmatprep.subr.mxu0 0.0
    %222 = vmatpush1.xpose.msra.mxu0 0.0
    %223 = vmatprep.subr.mxu0 0.0
    %224 = vmatpush1.xpose.msra.mxu0 0.0
    %225 = vmatprep.subr.mxu0 0.0
    %226 = vmatpush1.xpose.msra.mxu0 0.0
    %227 = vmatprep.subr.mxu0 0.0
    %228 = vmatpush1.xpose.msra.mxu0 0.0
    %229 = vmatprep.subr.mxu0 0.0
    %230 = vmatpush1.xpose.msra.mxu0 0.0
    %231 = vmatprep.subr.mxu0 0.0
    %232 = vmatpush1.xpose.msra.mxu0 0.0
    %233 = vmatprep.subr.mxu0 0.0
    %234 = vmatpush1.xpose.msra.mxu0 0.0
    %235 = vmatprep.subr.mxu0 0.0
    %236 = vmatpush1.xpose.msra.mxu0 0.0
    %237 = vmatprep.subr.mxu0 0.0
    %238 = vmatpush1.xpose.msra.mxu0 0.0
    %239 = vmatprep.subr.mxu0 0.0
    %240 = vmatpush1.xpose.msra.mxu0 0.0
    %241 = vmatprep.subr.mxu0 0.0
    %242 = vmatpush1.xpose.msra.mxu0 0.0
    %243 = vmatprep.subr.mxu0 0.0
    %244 = vmatpush1.xpose.msra.mxu0 0.0
    %245 = vmatprep.subr.mxu0 0.0
    %246 = vmatpush1.xpose.msra.mxu0 0.0
    %247 = vmatprep.subr.mxu0 0.0
    %248 = vmatpush1.xpose.msra.mxu0 0.0
    %249 = vmatprep.subr.mxu0 0.0
    %250 = vmatpush1.xpose.msra.mxu0 0.0
    %251 = vmatprep.subr.mxu0 0.0
    %252 = vmatpush1.xpose.msra.mxu0 0.0
    %253 = vmatprep.subr.mxu0 0.0
    %254 = vmatpush1.xpose.msra.mxu0 0.0
    %255 = vmatprep.subr.mxu0 0.0
    %256 = vmatpush1.xpose.msra.mxu0 0.0
    %257 = vmatprep.subr.mxu0 0.0
    %258 = vmatpush1.xpose.msra.mxu0 0.0
    %259 = vmatprep.subr.mxu0 0.0
    %260 = vmatpush1.xpose.msra.mxu0 0.0
    %261 = vmatprep.subr.mxu0 0.0
    %262 = vmatpush1.xpose.msra.mxu0 0.0
    %263 = vmatprep.mubr.f32.mxu0 0.0
    %264 = vmatmul.mubr.f32.gmra.mrb[0].mxu0 %v191
    %v265 = vpop.f32.mrb[0].mxu0
    %v266 = vadd.f32 %v182, %v265
    %v267 = vpop.f32.mrb[0].mxu0
    %268 = vmatprep.mubr.f32.mxu0 0.0
    %269 = vmatmul.mubr.f32.gmra.mrb[0].mxu0 %v193
    %v270 = vpop.f32.mrb[0].mxu0
    %v271 = vadd.f32 %v183, %v270
    %v272 = vpop.f32.mrb[0].mxu0
    %273 = vdwg.mxu0
    %vm274 = vcmask 130048
    %v275 = vsel %vm274, %v266, -inf
    %276 = vmax.xlane.f32.xlu0 %v275
    %v277 = vpop.xlane.xlu0 %276
    %v278 = vsel %vm274, %v271, -inf
    %279 = vmax.xlane.f32.xlu0 %v278
    %v280 = vpop.xlane.xlu0 %279
    %v281 = vsub.f32 %v266, %v277
    %v282 = vsub.f32 %v271, %v280
    %v283 = vmul.f32 %v281, 1.442695
    %v284 = vpow.pop %v283
    %v285 = vmul.f32 %v282, 1.442695
    %v286 = vpow.pop %v285
    %v287 = vsel %vm274, %v284, 0.0
    %288 = vadd.xlane.f32.xlu0 %v287
    %v289 = vpop.xlane.xlu0 %288
    %v290 = vsel %vm274, %v286, 0.0
    %291 = vadd.xlane.f32.xlu0 %v290
    %v292 = vpop.xlane.xlu0 %291
    %v293 = vrcp.pop %v289
    %v294 = vrcp.pop %v292
    %v295 = vmul.f32 %v284, %v293
    %v296 = vmul.f32 %v286, %v294
    %297 = vrot.lane.b32.xlu0 %v131, 64
    %v298 = vpop.permute.xlu0 %297
    %299 = vrot.lane.b32.xlu0 %v136, 64
    %v300 = vpop.permute.xlu0 %299
    %v304 = vsel %vm274, %v295, 0
    %v307 = vsel %vm274, %v296, 0
    %309 = vmatprep.subr.mxu0 0.0
    %310 = vmatpush1.msra.mxu0 %v298
    %311 = vmatprep.subr.mxu0 0.0
    %312 = vmatpush1.msra.mxu0 %v300
    %313 = vmatprep.subr.mxu0 0.0
    %314 = vmatpush1.msra.mxu0 0.0
    %315 = vmatprep.subr.mxu0 0.0
    %316 = vmatpush1.msra.mxu0 0.0
    %317 = vmatprep.subr.mxu0 0.0
    %318 = vmatpush1.msra.mxu0 0.0
    %319 = vmatprep.subr.mxu0 0.0
    %320 = vmatpush1.msra.mxu0 0.0
    %321 = vmatprep.subr.mxu0 0.0
    %322 = vmatpush1.msra.mxu0 0.0
    %323 = vmatprep.subr.mxu0 0.0
    %324 = vmatpush1.msra.mxu0 0.0
    %325 = vmatprep.subr.mxu0 0.0
    %326 = vmatpush1.msra.mxu0 0.0
    %327 = vmatprep.subr.mxu0 0.0
    %328 = vmatpush1.msra.mxu0 0.0
    %329 = vmatprep.subr.mxu0 0.0
    %330 = vmatpush1.msra.mxu0 0.0
    %331 = vmatprep.subr.mxu0 0.0
    %332 = vmatpush1.msra.mxu0 0.0
    %333 = vmatprep.subr.mxu0 0.0
    %334 = vmatpush1.msra.mxu0 0.0
    %335 = vmatprep.subr.mxu0 0.0
    %336 = vmatpush1.msra.mxu0 0.0
    %337 = vmatprep.subr.mxu0 0.0
    %338 = vmatpush1.msra.mxu0 0.0
    %339 = vmatprep.subr.mxu0 0.0
    %340 = vmatpush1.msra.mxu0 0.0
    %341 = vmatprep.subr.mxu0 0.0
    %342 = vmatpush1.msra.mxu0 0.0
    %343 = vmatprep.subr.mxu0 0.0
    %344 = vmatpush1.msra.mxu0 0.0
    %345 = vmatprep.subr.mxu0 0.0
    %346 = vmatpush1.msra.mxu0 0.0
    %347 = vmatprep.subr.mxu0 0.0
    %348 = vmatpush1.msra.mxu0 0.0
    %349 = vmatprep.subr.mxu0 0.0
    %350 = vmatpush1.msra.mxu0 0.0
    %351 = vmatprep.subr.mxu0 0.0
    %352 = vmatpush1.msra.mxu0 0.0
    %353 = vmatprep.subr.mxu0 0.0
    %354 = vmatpush1.msra.mxu0 0.0
    %355 = vmatprep.subr.mxu0 0.0
    %356 = vmatpush1.msra.mxu0 0.0
    %357 = vmatprep.subr.mxu0 0.0
    %358 = vmatpush1.msra.mxu0 0.0
    %359 = vmatprep.subr.mxu0 0.0
    %360 = vmatpush1.msra.mxu0 0.0
    %361 = vmatprep.subr.mxu0 0.0
    %362 = vmatpush1.msra.mxu0 0.0
    %363 = vmatprep.subr.mxu0 0.0
    %364 = vmatpush1.msra.mxu0 0.0
    %365 = vmatprep.subr.mxu0 0.0
    %366 = vmatpush1.msra.mxu0 0.0
    %367 = vmatprep.subr.mxu0 0.0
    %368 = vmatpush1.msra.mxu0 0.0
    %369 = vmatprep.subr.mxu0 0.0
    %370 = vmatpush1.msra.mxu0 0.0
    %371 = vmatprep.subr.mxu0 0.0
    %372 = vmatpush1.msra.mxu0 0.0
    %373 = vmatprep.mubr.f32.mxu0 0.0
    %374 = vmatmul.mubr.f32.gmra.mrb[0].mxu0 %v304
    %v375 = vpop.f32.mrb[0].mxu0
    %v376 = vadd.f32 0.0, %v375
    %v377 = vpop.f32.mrb[0].mxu0
    %378 = vmatprep.mubr.f32.mxu0 0.0
    %379 = vmatmul.mubr.f32.gmra.mrb[0].mxu0 %v307
    %v380 = vpop.f32.mrb[0].mxu0
    %v381 = vadd.f32 0.0, %v380
    %v382 = vpop.f32.mrb[0].mxu0
    %383 = vdwg.mxu0
    %384 = vrot.lane.b32.xlu0 %v131, 120
    %v385 = vpop.permute.xlu0 %384
    %386 = vrot.lane.b32.xlu0 %v136, 120
    %v387 = vpop.permute.xlu0 %386
    %388 = vrot.lane.b32.xlu0 %v131, 88
    %v389 = vpop.permute.xlu0 %388
    %390 = vrot.lane.b32.xlu0 %v136, 88
    %v391 = vpop.permute.xlu0 %390
    %v392 = vsel %vm190, %v385, 0
    %v394 = vsel %vm190, %v387, 0
    %v396 = vsel %vm190, %v389, 0
    %v398 = vsel %vm190, %v391, 0
    %400 = vmatprep.subr.mxu0 0.0
    %401 = vmatpush1.xpose.msra.mxu0 %v396
    %402 = vmatprep.subr.mxu0 0.0
    %403 = vmatpush1.xpose.msra.mxu0 %v398
    %404 = vmatprep.subr.mxu0 0.0
    %405 = vmatpush1.xpose.msra.mxu0 0.0
    %406 = vmatprep.subr.mxu0 0.0
    %407 = vmatpush1.xpose.msra.mxu0 0.0
    %408 = vmatprep.subr.mxu0 0.0
    %409 = vmatpush1.xpose.msra.mxu0 0.0
    %410 = vmatprep.subr.mxu0 0.0
    %411 = vmatpush1.xpose.msra.mxu0 0.0
    %412 = vmatprep.subr.mxu0 0.0
    %413 = vmatpush1.xpose.msra.mxu0 0.0
    %414 = vmatprep.subr.mxu0 0.0
    %415 = vmatpush1.xpose.msra.mxu0 0.0
    %416 = vmatprep.subr.mxu0 0.0
    %417 = vmatpush1.xpose.msra.mxu0 0.0
    %418 = vmatprep.subr.mxu0 0.0
    %419 = vmatpush1.xpose.msra.mxu0 0.0
    %420 = vmatprep.subr.mxu0 0.0
    %421 = vmatpush1.xpose.msra.mxu0 0.0
    %422 = vmatprep.subr.mxu0 0.0
    %423 = vmatpush1.xpose.msra.mxu0 0.0
    %424 = vmatprep.subr.mxu0 0.0
    %425 = vmatpush1.xpose.msra.mxu0 0.0
    %426 = vmatprep.subr.mxu0 0.0
    %427 = vmatpush1.xpose.msra.mxu0 0.0
    %428 = vmatprep.subr.mxu0 0.0
    %429 = vmatpush1.xpose.msra.mxu0 0.0
    %430 = vmatprep.subr.mxu0 0.0
    %431 = vmatpush1.xpose.msra.mxu0 0.0
    %432 = vmatprep.subr.mxu0 0.0
    %433 = vmatpush1.xpose.msra.mxu0 0.0
    %434 = vmatprep.subr.mxu0 0.0
    %435 = vmatpush1.xpose.msra.mxu0 0.0
    %436 = vmatprep.subr.mxu0 0.0
    %437 = vmatpush1.xpose.msra.mxu0 0.0
    %438 = vmatprep.subr.mxu0 0.0
    %439 = vmatpush1.xpose.msra.mxu0 0.0
    %440 = vmatprep.subr.mxu0 0.0
    %441 = vmatpush1.xpose.msra.mxu0 0.0
    %442 = vmatprep.subr.mxu0 0.0
    %443 = vmatpush1.xpose.msra.mxu0 0.0
    %444 = vmatprep.subr.mxu0 0.0
    %445 = vmatpush1.xpose.msra.mxu0 0.0
    %446 = vmatprep.subr.mxu0 0.0
    %447 = vmatpush1.xpose.msra.mxu0 0.0
    %448 = vmatprep.subr.mxu0 0.0
    %449 = vmatpush1.xpose.msra.mxu0 0.0
    %450 = vmatprep.subr.mxu0 0.0
    %451 = vmatpush1.xpose.msra.mxu0 0.0
    %452 = vmatprep.subr.mxu0 0.0
    %453 = vmatpush1.xpose.msra.mxu0 0.0
    %454 = vmatprep.subr.mxu0 0.0
    %455 = vmatpush1.xpose.msra.mxu0 0.0
    %456 = vmatprep.subr.mxu0 0.0
    %457 = vmatpush1.xpose.msra.mxu0 0.0
    %458 = vmatprep.subr.mxu0 0.0
    %459 = vmatpush1.xpose.msra.mxu0 0.0
    %460 = vmatprep.subr.mxu0 0.0
    %461 = vmatpush1.xpose.msra.mxu0 0.0
    %462 = vmatprep.subr.mxu0 0.0
    %463 = vmatpush1.xpose.msra.mxu0 0.0
    %464 = vmatprep.mubr.f32.mxu0 0.0
    %465 = vmatmul.mubr.f32.gmra.mrb[0].mxu0 %v392
    %v466 = vpop.f32.mrb[0].mxu0
    %v467 = vadd.f32 %v182, %v466
    %v468 = vpop.f32.mrb[0].mxu0
    %469 = vmatprep.mubr.f32.mxu0 0.0
    %470 = vmatmul.mubr.f32.gmra.mrb[0].mxu0 %v394
    %v471 = vpop.f32.mrb[0].mxu0
    %v472 = vadd.f32 %v183, %v471
    %v473 = vpop.f32.mrb[0].mxu0
    %474 = vdwg.mxu0
    %v475 = vsel %vm274, %v467, -inf
    %476 = vmax.xlane.f32.xlu0 %v475
    %v477 = vpop.xlane.xlu0 %476
    %v478 = vsel %vm274, %v472, -inf
    %479 = vmax.xlane.f32.xlu0 %v478
    %v480 = vpop.xlane.xlu0 %479
    %v481 = vsub.f32 %v467, %v477
    %v482 = vsub.f32 %v472, %v480
    %v483 = vmul.f32 %v481, 1.442695
    %v484 = vpow.pop %v483
    %v485 = vmul.f32 %v482, 1.442695
    %v486 = vpow.pop %v485
    %v487 = vsel %vm274, %v484, 0.0
    %488 = vadd.xlane.f32.xlu0 %v487
    %v489 = vpop.xlane.xlu0 %488
    %v490 = vsel %vm274, %v486, 0.0
    %491 = vadd.xlane.f32.xlu0 %v490
    %v492 = vpop.xlane.xlu0 %491
    %v493 = vrcp.pop %v489
    %v494 = vrcp.pop %v492
    %v495 = vmul.f32 %v484, %v493
    %v496 = vmul.f32 %v486, %v494
    %497 = vrot.lane.b32.xlu0 %v131, 56
    %v498 = vpop.permute.xlu0 %497
    %499 = vrot.lane.b32.xlu0 %v136, 56
    %v500 = vpop.permute.xlu0 %499
    %v504 = vsel %vm274, %v495, 0
    %v507 = vsel %vm274, %v496, 0
    %509 = vmatprep.subr.mxu0 0.0
    %510 = vmatpush1.msra.mxu0 %v498
    %511 = vmatprep.subr.mxu0 0.0
    %512 = vmatpush1.msra.mxu0 %v500
    %513 = vmatprep.subr.mxu0 0.0
    %514 = vmatpush1.msra.mxu0 0.0
    %515 = vmatprep.subr.mxu0 0.0
    %516 = vmatpush1.msra.mxu0 0.0
    %517 = vmatprep.subr.mxu0 0.0
    %518 = vmatpush1.msra.mxu0 0.0
    %519 = vmatprep.subr.mxu0 0.0
    %520 = vmatpush1.msra.mxu0 0.0
    %521 = vmatprep.subr.mxu0 0.0
    %522 = vmatpush1.msra.mxu0 0.0
    %523 = vmatprep.subr.mxu0 0.0
    %524 = vmatpush1.msra.mxu0 0.0
    %525 = vmatprep.subr.mxu0 0.0
    %526 = vmatpush1.msra.mxu0 0.0
    %527 = vmatprep.subr.mxu0 0.0
    %528 = vmatpush1.msra.mxu0 0.0
    %529 = vmatprep.subr.mxu0 0.0
    %530 = vmatpush1.msra.mxu0 0.0
    %531 = vmatprep.subr.mxu0 0.0
    %532 = vmatpush1.msra.mxu0 0.0
    %533 = vmatprep.subr.mxu0 0.0
    %534 = vmatpush1.msra.mxu0 0.0
    %535 = vmatprep.subr.mxu0 0.0
    %536 = vmatpush1.msra.mxu0 0.0
    %537 = vmatprep.subr.mxu0 0.0
    %538 = vmatpush1.msra.mxu0 0.0
    %539 = vmatprep.subr.mxu0 0.0
    %540 = vmatpush1.msra.mxu0 0.0
    %541 = vmatprep.subr.mxu0 0.0
    %542 = vmatpush1.msra.mxu0 0.0
    %543 = vmatprep.subr.mxu0 0.0
    %544 = vmatpush1.msra.mxu0 0.0
    %545 = vmatprep.subr.mxu0 0.0
    %546 = vmatpush1.msra.mxu0 0.0
    %547 = vmatprep.subr.mxu0 0.0
    %548 = vmatpush1.msra.mxu0 0.0
    %549 = vmatprep.subr.mxu0 0.0
    %550 = vmatpush1.msra.mxu0 0.0
    %551 = vmatprep.subr.mxu0 0.0
    %552 = vmatpush1.msra.mxu0 0.0
    %553 = vmatprep.subr.mxu0 0.0
    %554 = vmatpush1.msra.mxu0 0.0
    %555 = vmatprep.subr.mxu0 0.0
    %556 = vmatpush1.msra.mxu0 0.0
    %557 = vmatprep.subr.mxu0 0.0
    %558 = vmatpush1.msra.mxu0 0.0
    %559 = vmatprep.subr.mxu0 0.0
    %560 = vmatpush1.msra.mxu0 0.0
    %561 = vmatprep.subr.mxu0 0.0
    %562 = vmatpush1.msra.mxu0 0.0
    %563 = vmatprep.subr.mxu0 0.0
    %564 = vmatpush1.msra.mxu0 0.0
    %565 = vmatprep.subr.mxu0 0.0
    %566 = vmatpush1.msra.mxu0 0.0
    %567 = vmatprep.subr.mxu0 0.0
    %568 = vmatpush1.msra.mxu0 0.0
    %569 = vmatprep.subr.mxu0 0.0
    %570 = vmatpush1.msra.mxu0 0.0
    %571 = vmatprep.subr.mxu0 0.0
    %572 = vmatpush1.msra.mxu0 0.0
    %573 = vmatprep.mubr.f32.mxu0 0.0
    %574 = vmatmul.mubr.f32.gmra.mrb[0].mxu0 %v504
    %v575 = vpop.f32.mrb[0].mxu0
    %v576 = vadd.f32 0.0, %v575
    %v577 = vpop.f32.mrb[0].mxu0
    %578 = vmatprep.mubr.f32.mxu0 0.0
    %579 = vmatmul.mubr.f32.gmra.mrb[0].mxu0 %v507
    %v580 = vpop.f32.mrb[0].mxu0
    %v581 = vadd.f32 0.0, %v580
    %v582 = vpop.f32.mrb[0].mxu0
    %583 = vdwg.mxu0
    %585 = vrot.lane.b32.xlu0 %v43, 32
    %v586 = vpop.permute.xlu0 %585
    %v589 = vsel %vm190, %v576, 0
    %v592 = vsel %vm190, %v581, 0
    %594 = vmatprep.subr.mxu0 0.0
    %595 = vmatpush1.msra.mxu0 %v586
    %596 = vmatprep.subr.mxu0 0.0
    %597 = vmatpush1.msra.mxu0 0.0
    %598 = vmatprep.subr.mxu0 0.0
    %599 = vmatpush1.msra.mxu0 0.0
    %600 = vmatprep.subr.mxu0 0.0
    %601 = vmatpush1.msra.mxu0 0.0
    %602 = vmatprep.subr.mxu0 0.0
    %603 = vmatpush1.msra.mxu0 0.0
    %604 = vmatprep.subr.mxu0 0.0
    %605 = vmatpush1.msra.mxu0 0.0
    %606 = vmatprep.subr.mxu0 0.0
    %607 = vmatpush1.msra.mxu0 0.0
    %608 = vmatprep.subr.mxu0 0.0
    %609 = vmatpush1.msra.mxu0 0.0
    %610 = vmatprep.subr.mxu0 0.0
    %611 = vmatpush1.msra.mxu0 0.0
    %612 = vmatprep.subr.mxu0 0.0
    %613 = vmatpush1.msra.mxu0 0.0
    %614 = vmatprep.subr.mxu0 0.0
    %615 = vmatpush1.msra.mxu0 0.0
    %616 = vmatprep.subr.mxu0 0.0
    %617 = vmatpush1.msra.mxu0 0.0
    %618 = vmatprep.subr.mxu0 0.0
    %619 = vmatpush1.msra.mxu0 0.0
    %620 = vmatprep.subr.mxu0 0.0
    %621 = vmatpush1.msra.mxu0 0.0
    %622 = vmatprep.subr.mxu0 0.0
    %623 = vmatpush1.msra.mxu0 0.0
    %624 = vmatprep.subr.mxu0 0.0
    %625 = vmatpush1.msra.mxu0 0.0
    %626 = vmatprep.subr.mxu0 0.0
    %627 = vmatpush1.msra.mxu0 0.0
    %628 = vmatprep.subr.mxu0 0.0
    %629 = vmatpush1.msra.mxu0 0.0
    %630 = vmatprep.subr.mxu0 0.0
    %631 = vmatpush1.msra.mxu0 0.0
    %632 = vmatprep.subr.mxu0 0.0
    %633 = vmatpush1.msra.mxu0 0.0
    %634 = vmatprep.subr.mxu0 0.0
    %635 = vmatpush1.msra.mxu0 0.0
    %636 = vmatprep.subr.mxu0 0.0
    %637 = vmatpush1.msra.mxu0 0.0
    %638 = vmatprep.subr.mxu0 0.0
    %639 = vmatpush1.msra.mxu0 0.0
    %640 = vmatprep.subr.mxu0 0.0
    %641 = vmatpush1.msra.mxu0 0.0
    %642 = vmatprep.subr.mxu0 0.0
    %643 = vmatpush1.msra.mxu0 0.0
    %644 = vmatprep.subr.mxu0 0.0
    %645 = vmatpush1.msra.mxu0 0.0
    %646 = vmatprep.subr.mxu0 0.0
    %647 = vmatpush1.msra.mxu0 0.0
    %648 = vmatprep.subr.mxu0 0.0
    %649 = vmatpush1.msra.mxu0 0.0
    %650 = vmatprep.subr.mxu0 0.0
    %651 = vmatpush1.msra.mxu0 0.0
    %652 = vmatprep.subr.mxu0 0.0
    %653 = vmatpush1.msra.mxu0 0.0
    %654 = vmatprep.subr.mxu0 0.0
    %655 = vmatpush1.msra.mxu0 0.0
    %656 = vmatprep.subr.mxu0 0.0
    %657 = vmatpush1.msra.mxu0 0.0
    %658 = vmatprep.mubr.f32.mxu0 0.0
    %659 = vmatmul.mubr.f32.gmra.mrb[0].mxu0 %v589
    %v660 = vpop.f32.mrb[0].mxu0
    %v661 = vadd.f32 0.0, %v660
    %v662 = vpop.f32.mrb[0].mxu0
    %663 = vmatprep.mubr.f32.mxu0 0.0
    %664 = vmatmul.mubr.f32.gmra.mrb[0].mxu0 %v592
    %v665 = vpop.f32.mrb[0].mxu0
    %v666 = vadd.f32 0.0, %v665
    %v667 = vpop.f32.mrb[0].mxu0
    %668 = vdwg.mxu0
    %670 = vrot.lane.b32.xlu0 %v42, 32
    %v671 = vpop.permute.xlu0 %670
    %v674 = vsel %vm190, %v376, 0
    %v677 = vsel %vm190, %v381, 0
    %679 = vmatprep.subr.mxu0 0.0
    %680 = vmatpush1.msra.mxu0 %v671
    %681 = vmatprep.subr.mxu0 0.0
    %682 = vmatpush1.msra.mxu0 0.0
    %683 = vmatprep.subr.mxu0 0.0
    %684 = vmatpush1.msra.mxu0 0.0
    %685 = vmatprep.subr.mxu0 0.0
    %686 = vmatpush1.msra.mxu0 0.0
    %687 = vmatprep.subr.mxu0 0.0
    %688 = vmatpush1.msra.mxu0 0.0
    %689 = vmatprep.subr.mxu0 0.0
    %690 = vmatpush1.msra.mxu0 0.0
    %691 = vmatprep.subr.mxu0 0.0
    %692 = vmatpush1.msra.mxu0 0.0
    %693 = vmatprep.subr.mxu0 0.0
    %694 = vmatpush1.msra.mxu0 0.0
    %695 = vmatprep.subr.mxu0 0.0
    %696 = vmatpush1.msra.mxu0 0.0
    %697 = vmatprep.subr.mxu0 0.0
    %698 = vmatpush1.msra.mxu0 0.0
    %699 = vmatprep.subr.mxu0 0.0
    %700 = vmatpush1.msra.mxu0 0.0
    %701 = vmatprep.subr.mxu0 0.0
    %702 = vmatpush1.msra.mxu0 0.0
    %703 = vmatprep.subr.mxu0 0.0
    %704 = vmatpush1.msra.mxu0 0.0
    %705 = vmatprep.subr.mxu0 0.0
    %706 = vmatpush1.msra.mxu0 0.0
    %707 = vmatprep.subr.mxu0 0.0
    %708 = vmatpush1.msra.mxu0 0.0
    %709 = vmatprep.subr.mxu0 0.0
    %710 = vmatpush1.msra.mxu0 0.0
    %711 = vmatprep.subr.mxu0 0.0
    %712 = vmatpush1.msra.mxu0 0.0
    %713 = vmatprep.subr.mxu0 0.0
    %714 = vmatpush1.msra.mxu0 0.0
    %715 = vmatprep.subr.mxu0 0.0
    %716 = vmatpush1.msra.mxu0 0.0
    %717 = vmatprep.subr.mxu0 0.0
    %718 = vmatpush1.msra.mxu0 0.0
    %719 = vmatprep.subr.mxu0 0.0
    %720 = vmatpush1.msra.mxu0 0.0
    %721 = vmatprep.subr.mxu0 0.0
    %722 = vmatpush1.msra.mxu0 0.0
    %723 = vmatprep.subr.mxu0 0.0
    %724 = vmatpush1.msra.mxu0 0.0
    %725 = vmatprep.subr.mxu0 0.0
    %726 = vmatpush1.msra.mxu0 0.0
    %727 = vmatprep.subr.mxu0 0.0
    %728 = vmatpush1.msra.mxu0 0.0
    %729 = vmatprep.subr.mxu0 0.0
    %730 = vmatpush1.msra.mxu0 0.0
    %731 = vmatprep.subr.mxu0 0.0
    %732 = vmatpush1.msra.mxu0 0.0
    %733 = vmatprep.subr.mxu0 0.0
    %734 = vmatpush1.msra.mxu0 0.0
    %735 = vmatprep.subr.mxu0 0.0
    %736 = vmatpush1.msra.mxu0 0.0
    %737 = vmatprep.subr.mxu0 0.0
    %738 = vmatpush1.msra.mxu0 0.0
    %739 = vmatprep.subr.mxu0 0.0
    %740 = vmatpush1.msra.mxu0 0.0
    %741 = vmatprep.subr.mxu0 0.0
    %742 = vmatpush1.msra.mxu0 0.0
    %743 = vmatprep.mubr.f32.mxu0 0.0
    %744 = vmatmul.mubr.f32.gmra.mrb[0].mxu0 %v674
    %v745 = vpop.f32.mrb[0].mxu0
    %v746 = vadd.f32 %v661, %v745
    %v747 = vpop.f32.mrb[0].mxu0
    %748 = vmatprep.mubr.f32.mxu0 0.0
    %749 = vmatmul.mubr.f32.gmra.mrb[0].mxu0 %v677
    %v750 = vpop.f32.mrb[0].mxu0
    %v751 = vadd.f32 %v666, %v750
    %v752 = vpop.f32.mrb[0].mxu0
    %753 = vdwg.mxu0
    %754 = vrot.lane.b32.xlu0 %v131, 112
    %v755 = vpop.permute.xlu0 %754
    %756 = vrot.lane.b32.xlu0 %v136, 112
    %v757 = vpop.permute.xlu0 %756
    %758 = vrot.lane.b32.xlu0 %v131, 80
    %v759 = vpop.permute.xlu0 %758
    %760 = vrot.lane.b32.xlu0 %v136, 80
    %v761 = vpop.permute.xlu0 %760
    %v762 = vsel %vm190, %v755, 0
    %v764 = vsel %vm190, %v757, 0
    %v766 = vsel %vm190, %v759, 0
    %v768 = vsel %vm190, %v761, 0
    %770 = vmatprep.subr.mxu0 0.0
    %771 = vmatpush1.xpose.msra.mxu0 %v766
    %772 = vmatprep.subr.mxu0 0.0
    %773 = vmatpush1.xpose.msra.mxu0 %v768
    %774 = vmatprep.subr.mxu0 0.0
    %775 = vmatpush1.xpose.msra.mxu0 0.0
    %776 = vmatprep.subr.mxu0 0.0
    %777 = vmatpush1.xpose.msra.mxu0 0.0
    %778 = vmatprep.subr.mxu0 0.0
    %779 = vmatpush1.xpose.msra.mxu0 0.0
    %780 = vmatprep.subr.mxu0 0.0
    %781 = vmatpush1.xpose.msra.mxu0 0.0
    %782 = vmatprep.subr.mxu0 0.0
    %783 = vmatpush1.xpose.msra.mxu0 0.0
    %784 = vmatprep.subr.mxu0 0.0
    %785 = vmatpush1.xpose.msra.mxu0 0.0
    %786 = vmatprep.subr.mxu0 0.0
    %787 = vmatpush1.xpose.msra.mxu0 0.0
    %788 = vmatprep.subr.mxu0 0.0
    %789 = vmatpush1.xpose.msra.mxu0 0.0
    %790 = vmatprep.subr.mxu0 0.0
    %791 = vmatpush1.xpose.msra.mxu0 0.0
    %792 = vmatprep.subr.mxu0 0.0
    %793 = vmatpush1.xpose.msra.mxu0 0.0
    %794 = vmatprep.subr.mxu0 0.0
    %795 = vmatpush1.xpose.msra.mxu0 0.0
    %796 = vmatprep.subr.mxu0 0.0
    %797 = vmatpush1.xpose.msra.mxu0 0.0
    %798 = vmatprep.subr.mxu0 0.0
    %799 = vmatpush1.xpose.msra.mxu0 0.0
    %800 = vmatprep.subr.mxu0 0.0
    %801 = vmatpush1.xpose.msra.mxu0 0.0
    %802 = vmatprep.subr.mxu0 0.0
    %803 = vmatpush1.xpose.msra.mxu0 0.0
    %804 = vmatprep.subr.mxu0 0.0
    %805 = vmatpush1.xpose.msra.mxu0 0.0
    %806 = vmatprep.subr.mxu0 0.0
    %807 = vmatpush1.xpose.msra.mxu0 0.0
    %808 = vmatprep.subr.mxu0 0.0
    %809 = vmatpush1.xpose.msra.mxu0 0.0
    %810 = vmatprep.subr.mxu0 0.0
    %811 = vmatpush1.xpose.msra.mxu0 0.0
    %812 = vmatprep.subr.mxu0 0.0
    %813 = vmatpush1.xpose.msra.mxu0 0.0
    %814 = vmatprep.subr.mxu0 0.0
    %815 = vmatpush1.xpose.msra.mxu0 0.0
    %816 = vmatprep.subr.mxu0 0.0
    %817 = vmatpush1.xpose.msra.mxu0 0.0
    %818 = vmatprep.subr.mxu0 0.0
    %819 = vmatpush1.xpose.msra.mxu0 0.0
    %820 = vmatprep.subr.mxu0 0.0
    %821 = vmatpush1.xpose.msra.mxu0 0.0
    %822 = vmatprep.subr.mxu0 0.0
    %823 = vmatpush1.xpose.msra.mxu0 0.0
    %824 = vmatprep.subr.mxu0 0.0
    %825 = vmatpush1.xpose.msra.mxu0 0.0
    %826 = vmatprep.subr.mxu0 0.0
    %827 = vmatpush1.xpose.msra.mxu0 0.0
    %828 = vmatprep.subr.mxu0 0.0
    %829 = vmatpush1.xpose.msra.mxu0 0.0
    %830 = vmatprep.subr.mxu0 0.0
    %831 = vmatpush1.xpose.msra.mxu0 0.0
    %832 = vmatprep.subr.mxu0 0.0
    %833 = vmatpush1.xpose.msra.mxu0 0.0
    %834 = vmatprep.mubr.f32.mxu0 0.0
    %835 = vmatmul.mubr.f32.gmra.mrb[0].mxu0 %v762
    %v836 = vpop.f32.mrb[0].mxu0
    %v837 = vadd.f32 %v182, %v836
    %v838 = vpop.f32.mrb[0].mxu0
    %839 = vmatprep.mubr.f32.mxu0 0.0
    %840 = vmatmul.mubr.f32.gmra.mrb[0].mxu0 %v764
    %v841 = vpop.f32.mrb[0].mxu0
    %v842 = vadd.f32 %v183, %v841
    %v843 = vpop.f32.mrb[0].mxu0
    %844 = vdwg.mxu0
    %v845 = vsel %vm274, %v837, -inf
    %846 = vmax.xlane.f32.xlu0 %v845
    %v847 = vpop.xlane.xlu0 %846
    %v848 = vsel %vm274, %v842, -inf
    %849 = vmax.xlane.f32.xlu0 %v848
    %v850 = vpop.xlane.xlu0 %849
    %v851 = vsub.f32 %v837, %v847
    %v852 = vsub.f32 %v842, %v850
    %v853 = vmul.f32 %v851, 1.442695
    %v854 = vpow.pop %v853
    %v855 = vmul.f32 %v852, 1.442695
    %v856 = vpow.pop %v855
    %v857 = vsel %vm274, %v854, 0.0
    %858 = vadd.xlane.f32.xlu0 %v857
    %v859 = vpop.xlane.xlu0 %858
    %v860 = vsel %vm274, %v856, 0.0
    %861 = vadd.xlane.f32.xlu0 %v860
    %v862 = vpop.xlane.xlu0 %861
    %v863 = vrcp.pop %v859
    %v864 = vrcp.pop %v862
    %v865 = vmul.f32 %v854, %v863
    %v866 = vmul.f32 %v856, %v864
    %867 = vrot.lane.b32.xlu0 %v131, 48
    %v868 = vpop.permute.xlu0 %867
    %869 = vrot.lane.b32.xlu0 %v136, 48
    %v870 = vpop.permute.xlu0 %869
    %v874 = vsel %vm274, %v865, 0
    %v877 = vsel %vm274, %v866, 0
    %879 = vmatprep.subr.mxu0 0.0
    %880 = vmatpush1.msra.mxu0 %v868
    %881 = vmatprep.subr.mxu0 0.0
    %882 = vmatpush1.msra.mxu0 %v870
    %883 = vmatprep.subr.mxu0 0.0
    %884 = vmatpush1.msra.mxu0 0.0
    %885 = vmatprep.subr.mxu0 0.0
    %886 = vmatpush1.msra.mxu0 0.0
    %887 = vmatprep.subr.mxu0 0.0
    %888 = vmatpush1.msra.mxu0 0.0
    %889 = vmatprep.subr.mxu0 0.0
    %890 = vmatpush1.msra.mxu0 0.0
    %891 = vmatprep.subr.mxu0 0.0
    %892 = vmatpush1.msra.mxu0 0.0
    %893 = vmatprep.subr.mxu0 0.0
    %894 = vmatpush1.msra.mxu0 0.0
    %895 = vmatprep.subr.mxu0 0.0
    %896 = vmatpush1.msra.mxu0 0.0
    %897 = vmatprep.subr.mxu0 0.0
    %898 = vmatpush1.msra.mxu0 0.0
    %899 = vmatprep.subr.mxu0 0.0
    %900 = vmatpush1.msra.mxu0 0.0
    %901 = vmatprep.subr.mxu0 0.0
    %902 = vmatpush1.msra.mxu0 0.0
    %903 = vmatprep.subr.mxu0 0.0
    %904 = vmatpush1.msra.mxu0 0.0
    %905 = vmatprep.subr.mxu0 0.0
    %906 = vmatpush1.msra.mxu0 0.0
    %907 = vmatprep.subr.mxu0 0.0
    %908 = vmatpush1.msra.mxu0 0.0
    %909 = vmatprep.subr.mxu0 0.0
    %910 = vmatpush1.msra.mxu0 0.0
    %911 = vmatprep.subr.mxu0 0.0
    %912 = vmatpush1.msra.mxu0 0.0
    %913 = vmatprep.subr.mxu0 0.0
    %914 = vmatpush1.msra.mxu0 0.0
    %915 = vmatprep.subr.mxu0 0.0
    %916 = vmatpush1.msra.mxu0 0.0
    %917 = vmatprep.subr.mxu0 0.0
    %918 = vmatpush1.msra.mxu0 0.0
    %919 = vmatprep.subr.mxu0 0.0
    %920 = vmatpush1.msra.mxu0 0.0
    %921 = vmatprep.subr.mxu0 0.0
    %922 = vmatpush1.msra.mxu0 0.0
    %923 = vmatprep.subr.mxu0 0.0
    %924 = vmatpush1.msra.mxu0 0.0
    %925 = vmatprep.subr.mxu0 0.0
    %926 = vmatpush1.msra.mxu0 0.0
    %927 = vmatprep.subr.mxu0 0.0
    %928 = vmatpush1.msra.mxu0 0.0
    %929 = vmatprep.subr.mxu0 0.0
    %930 = vmatpush1.msra.mxu0 0.0
    %931 = vmatprep.subr.mxu0 0.0
    %932 = vmatpush1.msra.mxu0 0.0
    %933 = vmatprep.subr.mxu0 0.0
    %934 = vmatpush1.msra.mxu0 0.0
    %935 = vmatprep.subr.mxu0 0.0
    %936 = vmatpush1.msra.mxu0 0.0
    %937 = vmatprep.subr.mxu0 0.0
    %938 = vmatpush1.msra.mxu0 0.0
    %939 = vmatprep.subr.mxu0 0.0
    %940 = vmatpush1.msra.mxu0 0.0
    %941 = vmatprep.subr.mxu0 0.0
    %942 = vmatpush1.msra.mxu0 0.0
    %943 = vmatprep.mubr.f32.mxu0 0.0
    %944 = vmatmul.mubr.f32.gmra.mrb[0].mxu0 %v874
    %v945 = vpop.f32.mrb[0].mxu0
    %v946 = vadd.f32 0.0, %v945
    %v947 = vpop.f32.mrb[0].mxu0
    %948 = vmatprep.mubr.f32.mxu0 0.0
    %949 = vmatmul.mubr.f32.gmra.mrb[0].mxu0 %v877
    %v950 = vpop.f32.mrb[0].mxu0
    %v951 = vadd.f32 0.0, %v950
    %v952 = vpop.f32.mrb[0].mxu0
    %953 = vdwg.mxu0
    %955 = vrot.lane.b32.xlu0 %v44, 32
    %v956 = vpop.permute.xlu0 %955
    %v959 = vsel %vm190, %v946, 0
    %v962 = vsel %vm190, %v951, 0
    %964 = vmatprep.subr.mxu0 0.0
    %965 = vmatpush1.msra.mxu0 %v956
    %966 = vmatprep.subr.mxu0 0.0
    %967 = vmatpush1.msra.mxu0 0.0
    %968 = vmatprep.subr.mxu0 0.0
    %969 = vmatpush1.msra.mxu0 0.0
    %970 = vmatprep.subr.mxu0 0.0
    %971 = vmatpush1.msra.mxu0 0.0
    %972 = vmatprep.subr.mxu0 0.0
    %973 = vmatpush1.msra.mxu0 0.0
    %974 = vmatprep.subr.mxu0 0.0
    %975 = vmatpush1.msra.mxu0 0.0
    %976 = vmatprep.subr.mxu0 0.0
    %977 = vmatpush1.msra.mxu0 0.0
    %978 = vmatprep.subr.mxu0 0.0
    %979 = vmatpush1.msra.mxu0 0.0
    %980 = vmatprep.subr.mxu0 0.0
    %981 = vmatpush1.msra.mxu0 0.0
    %982 = vmatprep.subr.mxu0 0.0
    %983 = vmatpush1.msra.mxu0 0.0
    %984 = vmatprep.subr.mxu0 0.0
    %985 = vmatpush1.msra.mxu0 0.0
    %986 = vmatprep.subr.mxu0 0.0
    %987 = vmatpush1.msra.mxu0 0.0
    %988 = vmatprep.subr.mxu0 0.0
    %989 = vmatpush1.msra.mxu0 0.0
    %990 = vmatprep.subr.mxu0 0.0
    %991 = vmatpush1.msra.mxu0 0.0
    %992 = vmatprep.subr.mxu0 0.0
    %993 = vmatpush1.msra.mxu0 0.0
    %994 = vmatprep.subr.mxu0 0.0
    %995 = vmatpush1.msra.mxu0 0.0
    %996 = vmatprep.subr.mxu0 0.0
    %997 = vmatpush1.msra.mxu0 0.0
    %998 = vmatprep.subr.mxu0 0.0
    %999 = vmatpush1.msra.mxu0 0.0
    %1000 = vmatprep.subr.mxu0 0.0
    %1001 = vmatpush1.msra.mxu0 0.0
    %1002 = vmatprep.subr.mxu0 0.0
    %1003 = vmatpush1.msra.mxu0 0.0
    %1004 = vmatprep.subr.mxu0 0.0
    %1005 = vmatpush1.msra.mxu0 0.0
    %1006 = vmatprep.subr.mxu0 0.0
    %1007 = vmatpush1.msra.mxu0 0.0
    %1008 = vmatprep.subr.mxu0 0.0
    %1009 = vmatpush1.msra.mxu0 0.0
    %1010 = vmatprep.subr.mxu0 0.0
    %1011 = vmatpush1.msra.mxu0 0.0
    %1012 = vmatprep.subr.mxu0 0.0
    %1013 = vmatpush1.msra.mxu0 0.0
    %1014 = vmatprep.subr.mxu0 0.0
    %1015 = vmatpush1.msra.mxu0 0.0
    %1016 = vmatprep.subr.mxu0 0.0
    %1017 = vmatpush1.msra.mxu0 0.0
    %1018 = vmatprep.subr.mxu0 0.0
    %1019 = vmatpush1.msra.mxu0 0.0
    %1020 = vmatprep.subr.mxu0 0.0
    %1021 = vmatpush1.msra.mxu0 0.0
    %1022 = vmatprep.subr.mxu0 0.0
    %1023 = vmatpush1.msra.mxu0 0.0
    %1024 = vmatprep.subr.mxu0 0.0
    %1025 = vmatpush1.msra.mxu0 0.0
    %1026 = vmatprep.subr.mxu0 0.0
    %1027 = vmatpush1.msra.mxu0 0.0
    %1028 = vmatprep.mubr.f32.mxu0 0.0
    %1029 = vmatmul.mubr.f32.gmra.mrb[0].mxu0 %v959
    %v1030 = vpop.f32.mrb[0].mxu0
    %v1031 = vadd.f32 0.0, %v1030
    %v1032 = vpop.f32.mrb[0].mxu0
    %1033 = vmatprep.mubr.f32.mxu0 0.0
    %1034 = vmatmul.mubr.f32.gmra.mrb[0].mxu0 %v962
    %v1035 = vpop.f32.mrb[0].mxu0
    %v1036 = vadd.f32 0.0, %v1035
    %v1037 = vpop.f32.mrb[0].mxu0
    %1038 = vdwg.mxu0
    %v1039 = vadd.f32 %v746, %v1031
    %v1040 = vadd.f32 %v751, %v1036
    %1041 = vrot.lane.b32.xlu0 %v131, 104
    %v1042 = vpop.permute.xlu0 %1041
    %1043 = vrot.lane.b32.xlu0 %v136, 104
    %v1044 = vpop.permute.xlu0 %1043
    %1045 = vrot.lane.b32.xlu0 %v131, 72
    %v1046 = vpop.permute.xlu0 %1045
    %1047 = vrot.lane.b32.xlu0 %v136, 72
    %v1048 = vpop.permute.xlu0 %1047
    %v1049 = vsel %vm190, %v1042, 0
    %v1051 = vsel %vm190, %v1044, 0
    %v1053 = vsel %vm190, %v1046, 0
    %v1055 = vsel %vm190, %v1048, 0
    %1057 = vmatprep.subr.mxu0 0.0
    %1058 = vmatpush1.xpose.msra.mxu0 %v1053
    %1059 = vmatprep.subr.mxu0 0.0
    %1060 = vmatpush1.xpose.msra.mxu0 %v1055
    %1061 = vmatprep.subr.mxu0 0.0
    %1062 = vmatpush1.xpose.msra.mxu0 0.0
    %1063 = vmatprep.subr.mxu0 0.0
    %1064 = vmatpush1.xpose.msra.mxu0 0.0
    %1065 = vmatprep.subr.mxu0 0.0
    %1066 = vmatpush1.xpose.msra.mxu0 0.0
    %1067 = vmatprep.subr.mxu0 0.0
    %1068 = vmatpush1.xpose.msra.mxu0 0.0
    %1069 = vmatprep.subr.mxu0 0.0
    %1070 = vmatpush1.xpose.msra.mxu0 0.0
    %1071 = vmatprep.subr.mxu0 0.0
    %1072 = vmatpush1.xpose.msra.mxu0 0.0
    %1073 = vmatprep.subr.mxu0 0.0
    %1074 = vmatpush1.xpose.msra.mxu0 0.0
    %1075 = vmatprep.subr.mxu0 0.0
    %1076 = vmatpush1.xpose.msra.mxu0 0.0
    %1077 = vmatprep.subr.mxu0 0.0
    %1078 = vmatpush1.xpose.msra.mxu0 0.0
    %1079 = vmatprep.subr.mxu0 0.0
    %1080 = vmatpush1.xpose.msra.mxu0 0.0
    %1081 = vmatprep.subr.mxu0 0.0
    %1082 = vmatpush1.xpose.msra.mxu0 0.0
    %1083 = vmatprep.subr.mxu0 0.0
    %1084 = vmatpush1.xpose.msra.mxu0 0.0
    %1085 = vmatprep.subr.mxu0 0.0
    %1086 = vmatpush1.xpose.msra.mxu0 0.0
    %1087 = vmatprep.subr.mxu0 0.0
    %1088 = vmatpush1.xpose.msra.mxu0 0.0
    %1089 = vmatprep.subr.mxu0 0.0
    %1090 = vmatpush1.xpose.msra.mxu0 0.0
    %1091 = vmatprep.subr.mxu0 0.0
    %1092 = vmatpush1.xpose.msra.mxu0 0.0
    %1093 = vmatprep.subr.mxu0 0.0
    %1094 = vmatpush1.xpose.msra.mxu0 0.0
    %1095 = vmatprep.subr.mxu0 0.0
    %1096 = vmatpush1.xpose.msra.mxu0 0.0
    %1097 = vmatprep.subr.mxu0 0.0
    %1098 = vmatpush1.xpose.msra.mxu0 0.0
    %1099 = vmatprep.subr.mxu0 0.0
    %1100 = vmatpush1.xpose.msra.mxu0 0.0
    %1101 = vmatprep.subr.mxu0 0.0
    %1102 = vmatpush1.xpose.msra.mxu0 0.0
    %1103 = vmatprep.subr.mxu0 0.0
    %1104 = vmatpush1.xpose.msra.mxu0 0.0
    %1105 = vmatprep.subr.mxu0 0.0
    %1106 = vmatpush1.xpose.msra.mxu0 0.0
    %1107 = vmatprep.subr.mxu0 0.0
    %1108 = vmatpush1.xpose.msra.mxu0 0.0
    %1109 = vmatprep.subr.mxu0 0.0
    %1110 = vmatpush1.xpose.msra.mxu0 0.0
    %1111 = vmatprep.subr.mxu0 0.0
    %1112 = vmatpush1.xpose.msra.mxu0 0.0
    %1113 = vmatprep.subr.mxu0 0.0
    %1114 = vmatpush1.xpose.msra.mxu0 0.0
    %1115 = vmatprep.subr.mxu0 0.0
    %1116 = vmatpush1.xpose.msra.mxu0 0.0
    %1117 = vmatprep.subr.mxu0 0.0
    %1118 = vmatpush1.xpose.msra.mxu0 0.0
    %1119 = vmatprep.subr.mxu0 0.0
    %1120 = vmatpush1.xpose.msra.mxu0 0.0
    %1121 = vmatprep.mubr.f32.mxu0 0.0
    %1122 = vmatmul.mubr.f32.gmra.mrb[0].mxu0 %v1049
    %v1123 = vpop.f32.mrb[0].mxu0
    %v1124 = vadd.f32 %v182, %v1123
    %v1125 = vpop.f32.mrb[0].mxu0
    %1126 = vmatprep.mubr.f32.mxu0 0.0
    %1127 = vmatmul.mubr.f32.gmra.mrb[0].mxu0 %v1051
    %v1128 = vpop.f32.mrb[0].mxu0
    %v1129 = vadd.f32 %v183, %v1128
    %v1130 = vpop.f32.mrb[0].mxu0
    %1131 = vdwg.mxu0
    %v1132 = vsel %vm274, %v1124, -inf
    %1133 = vmax.xlane.f32.xlu0 %v1132
    %v1134 = vpop.xlane.xlu0 %1133
    %v1135 = vsel %vm274, %v1129, -inf
    %1136 = vmax.xlane.f32.xlu0 %v1135
    %v1137 = vpop.xlane.xlu0 %1136
    %v1138 = vsub.f32 %v1124, %v1134
    %v1139 = vsub.f32 %v1129, %v1137
    %v1140 = vmul.f32 %v1138, 1.442695
    %v1141 = vpow.pop %v1140
    %v1142 = vmul.f32 %v1139, 1.442695
    %v1143 = vpow.pop %v1142
    %v1144 = vsel %vm274, %v1141, 0.0
    %1145 = vadd.xlane.f32.xlu0 %v1144
    %v1146 = vpop.xlane.xlu0 %1145
    %v1147 = vsel %vm274, %v1143, 0.0
    %1148 = vadd.xlane.f32.xlu0 %v1147
    %v1149 = vpop.xlane.xlu0 %1148
    %v1150 = vrcp.pop %v1146
    %v1151 = vrcp.pop %v1149
    %v1152 = vmul.f32 %v1141, %v1150
    %v1153 = vmul.f32 %v1143, %v1151
    %1154 = vrot.lane.b32.xlu0 %v131, 40
    %v1155 = vpop.permute.xlu0 %1154
    %1156 = vrot.lane.b32.xlu0 %v136, 40
    %v1157 = vpop.permute.xlu0 %1156
    %v1161 = vsel %vm274, %v1152, 0
    %v1164 = vsel %vm274, %v1153, 0
    %1166 = vmatprep.subr.mxu0 0.0
    %1167 = vmatpush1.msra.mxu0 %v1155
    %1168 = vmatprep.subr.mxu0 0.0
    %1169 = vmatpush1.msra.mxu0 %v1157
    %1170 = vmatprep.subr.mxu0 0.0
    %1171 = vmatpush1.msra.mxu0 0.0
    %1172 = vmatprep.subr.mxu0 0.0
    %1173 = vmatpush1.msra.mxu0 0.0
    %1174 = vmatprep.subr.mxu0 0.0
    %1175 = vmatpush1.msra.mxu0 0.0
    %1176 = vmatprep.subr.mxu0 0.0
    %1177 = vmatpush1.msra.mxu0 0.0
    %1178 = vmatprep.subr.mxu0 0.0
    %1179 = vmatpush1.msra.mxu0 0.0
    %1180 = vmatprep.subr.mxu0 0.0
    %1181 = vmatpush1.msra.mxu0 0.0
    %1182 = vmatprep.subr.mxu0 0.0
    %1183 = vmatpush1.msra.mxu0 0.0
    %1184 = vmatprep.subr.mxu0 0.0
    %1185 = vmatpush1.msra.mxu0 0.0
    %1186 = vmatprep.subr.mxu0 0.0
    %1187 = vmatpush1.msra.mxu0 0.0
    %1188 = vmatprep.subr.mxu0 0.0
    %1189 = vmatpush1.msra.mxu0 0.0
    %1190 = vmatprep.subr.mxu0 0.0
    %1191 = vmatpush1.msra.mxu0 0.0
    %1192 = vmatprep.subr.mxu0 0.0
    %1193 = vmatpush1.msra.mxu0 0.0
    %1194 = vmatprep.subr.mxu0 0.0
    %1195 = vmatpush1.msra.mxu0 0.0
    %1196 = vmatprep.subr.mxu0 0.0
    %1197 = vmatpush1.msra.mxu0 0.0
    %1198 = vmatprep.subr.mxu0 0.0
    %1199 = vmatpush1.msra.mxu0 0.0
    %1200 = vmatprep.subr.mxu0 0.0
    %1201 = vmatpush1.msra.mxu0 0.0
    %1202 = vmatprep.subr.mxu0 0.0
    %1203 = vmatpush1.msra.mxu0 0.0
    %1204 = vmatprep.subr.mxu0 0.0
    %1205 = vmatpush1.msra.mxu0 0.0
    %1206 = vmatprep.subr.mxu0 0.0
    %1207 = vmatpush1.msra.mxu0 0.0
    %1208 = vmatprep.subr.mxu0 0.0
    %1209 = vmatpush1.msra.mxu0 0.0
    %1210 = vmatprep.subr.mxu0 0.0
    %1211 = vmatpush1.msra.mxu0 0.0
    %1212 = vmatprep.subr.mxu0 0.0
    %1213 = vmatpush1.msra.mxu0 0.0
    %1214 = vmatprep.subr.mxu0 0.0
    %1215 = vmatpush1.msra.mxu0 0.0
    %1216 = vmatprep.subr.mxu0 0.0
    %1217 = vmatpush1.msra.mxu0 0.0
    %1218 = vmatprep.subr.mxu0 0.0
    %1219 = vmatpush1.msra.mxu0 0.0
    %1220 = vmatprep.subr.mxu0 0.0
    %1221 = vmatpush1.msra.mxu0 0.0
    %1222 = vmatprep.subr.mxu0 0.0
    %1223 = vmatpush1.msra.mxu0 0.0
    %1224 = vmatprep.subr.mxu0 0.0
    %1225 = vmatpush1.msra.mxu0 0.0
    %1226 = vmatprep.subr.mxu0 0.0
    %1227 = vmatpush1.msra.mxu0 0.0
    %1228 = vmatprep.subr.mxu0 0.0
    %1229 = vmatpush1.msra.mxu0 0.0
    %1230 = vmatprep.mubr.f32.mxu0 0.0
    %1231 = vmatmul.mubr.f32.gmra.mrb[0].mxu0 %v1161
    %v1232 = vpop.f32.mrb[0].mxu0
    %v1233 = vadd.f32 0.0, %v1232
    %v1234 = vpop.f32.mrb[0].mxu0
    %1235 = vmatprep.mubr.f32.mxu0 0.0
    %1236 = vmatmul.mubr.f32.gmra.mrb[0].mxu0 %v1164
    %v1237 = vpop.f32.mrb[0].mxu0
    %v1238 = vadd.f32 0.0, %v1237
    %v1239 = vpop.f32.mrb[0].mxu0
    %1240 = vdwg.mxu0
    %1242 = vrot.lane.b32.xlu0 %v45, 32
    %v1243 = vpop.permute.xlu0 %1242
    %v1246 = vsel %vm190, %v1233, 0
    %v1249 = vsel %vm190, %v1238, 0
    %1251 = vmatprep.subr.mxu0 0.0
    %1252 = vmatpush1.msra.mxu0 %v1243
    %1253 = vmatprep.subr.mxu0 0.0
    %1254 = vmatpush1.msra.mxu0 0.0
    %1255 = vmatprep.subr.mxu0 0.0
    %1256 = vmatpush1.msra.mxu0 0.0
    %1257 = vmatprep.subr.mxu0 0.0
    %1258 = vmatpush1.msra.mxu0 0.0
    %1259 = vmatprep.subr.mxu0 0.0
    %1260 = vmatpush1.msra.mxu0 0.0
    %1261 = vmatprep.subr.mxu0 0.0
    %1262 = vmatpush1.msra.mxu0 0.0
    %1263 = vmatprep.subr.mxu0 0.0
    %1264 = vmatpush1.msra.mxu0 0.0
    %1265 = vmatprep.subr.mxu0 0.0
    %1266 = vmatpush1.msra.mxu0 0.0
    %1267 = vmatprep.subr.mxu0 0.0
    %1268 = vmatpush1.msra.mxu0 0.0
    %1269 = vmatprep.subr.mxu0 0.0
    %1270 = vmatpush1.msra.mxu0 0.0
    %1271 = vmatprep.subr.mxu0 0.0
    %1272 = vmatpush1.msra.mxu0 0.0
    %1273 = vmatprep.subr.mxu0 0.0
    %1274 = vmatpush1.msra.mxu0 0.0
    %1275 = vmatprep.subr.mxu0 0.0
    %1276 = vmatpush1.msra.mxu0 0.0
    %1277 = vmatprep.subr.mxu0 0.0
    %1278 = vmatpush1.msra.mxu0 0.0
    %1279 = vmatprep.subr.mxu0 0.0
    %1280 = vmatpush1.msra.mxu0 0.0
    %1281 = vmatprep.subr.mxu0 0.0
    %1282 = vmatpush1.msra.mxu0 0.0
    %1283 = vmatprep.subr.mxu0 0.0
    %1284 = vmatpush1.msra.mxu0 0.0
    %1285 = vmatprep.subr.mxu0 0.0
    %1286 = vmatpush1.msra.mxu0 0.0
    %1287 = vmatprep.subr.mxu0 0.0
    %1288 = vmatpush1.msra.mxu0 0.0
    %1289 = vmatprep.subr.mxu0 0.0
    %1290 = vmatpush1.msra.mxu0 0.0
    %1291 = vmatprep.subr.mxu0 0.0
    %1292 = vmatpush1.msra.mxu0 0.0
    %1293 = vmatprep.subr.mxu0 0.0
    %1294 = vmatpush1.msra.mxu0 0.0
    %1295 = vmatprep.subr.mxu0 0.0
    %1296 = vmatpush1.msra.mxu0 0.0
    %1297 = vmatprep.subr.mxu0 0.0
    %1298 = vmatpush1.msra.mxu0 0.0
    %1299 = vmatprep.subr.mxu0 0.0
    %1300 = vmatpush1.msra.mxu0 0.0
    %1301 = vmatprep.subr.mxu0 0.0
    %1302 = vmatpush1.msra.mxu0 0.0
    %1303 = vmatprep.subr.mxu0 0.0
    %1304 = vmatpush1.msra.mxu0 0.0
    %1305 = vmatprep.subr.mxu0 0.0
    %1306 = vmatpush1.msra.mxu0 0.0
    %1307 = vmatprep.subr.mxu0 0.0
    %1308 = vmatpush1.msra.mxu0 0.0
    %1309 = vmatprep.subr.mxu0 0.0
    %1310 = vmatpush1.msra.mxu0 0.0
    %1311 = vmatprep.subr.mxu0 0.0
    %1312 = vmatpush1.msra.mxu0 0.0
    %1313 = vmatprep.subr.mxu0 0.0
    %1314 = vmatpush1.msra.mxu0 0.0
    %1315 = vmatprep.mubr.f32.mxu0 0.0
    %1316 = vmatmul.mubr.f32.gmra.mrb[0].mxu0 %v1246
    %v1317 = vpop.f32.mrb[0].mxu0
    %v1318 = vadd.f32 0.0, %v1317
    %v1319 = vpop.f32.mrb[0].mxu0
    %1320 = vmatprep.mubr.f32.mxu0 0.0
    %1321 = vmatmul.mubr.f32.gmra.mrb[0].mxu0 %v1249
    %v1322 = vpop.f32.mrb[0].mxu0
    %v1323 = vadd.f32 0.0, %v1322
    %v1324 = vpop.f32.mrb[0].mxu0
    %1325 = vdwg.mxu0
    %v1326 = vadd.f32 %v1039, %v1318
    %v1327 = vadd.f32 %v1040, %v1323
    %v1328 = vadd.f32 %v1326, %v55
    %v1329 = vadd.f32 %v1327, %v55
    %v1330 = vadd.f32 %v40, %v1328
    %v1331 = vadd.f32 %v41, %v1329
    %v1332 = vsel %vm57, %v1330, 0.0
    %1333 = vadd.xlane.f32.xlu0 %v1332
    %v1334 = vpop.xlane.xlu0 %1333
    %v1335 = vsel %vm57, %v1331, 0.0
    %1336 = vadd.xlane.f32.xlu0 %v1335
    %v1337 = vpop.xlane.xlu0 %1336
    %v1338 = vrcp.pop 32.0
    %v1339 = vmul.f32 %v1334, %v1338
    %v1340 = vmul.f32 %v1337, %v1338
    %v1341 = vsub.f32 %v1330, %v1339
    %v1342 = vsub.f32 %v1331, %v1340
    %v1343 = vmul.f32 %v1341, %v1341
    %v1344 = vmul.f32 %v1342, %v1342
    %v1345 = vsel %vm57, %v1343, 0.0
    %1346 = vadd.xlane.f32.xlu0 %v1345
    %v1347 = vpop.xlane.xlu0 %1346
    %v1348 = vsel %vm57, %v1344, 0.0
    %1349 = vadd.xlane.f32.xlu0 %v1348
    %v1350 = vpop.xlane.xlu0 %1349
    %v1351 = vmul.f32 %v1347, %v1338
    %v1352 = vmul.f32 %v1350, %v1338
    %v1353 = vadd.f32 %v1351, 1e-05
    %v1354 = vadd.f32 %v1352, 1e-05
    %v1355 = vrsqrt.pop %v1353
    %v1356 = vrsqrt.pop %v1354
    %v1357 = vmul.f32 %v1341, %v1355
    %v1358 = vmul.f32 %v1342, %v1356
    %v1359 = vmul.f32 %v1357, %v56
    %v1360 = vmul.f32 %v1358, %v56
    %1362 = vrot.lane.b32.xlu0 %v56, 96
    %v1363 = vpop.permute.xlu0 %1362
    %v1365 = vadd.f32 %v1359, %v1363
    %v1366 = vadd.f32 %v1360, %v1363
    %1368 = vrot.lane.b32.xlu0 %v55, 96
    %v1369 = vpop.permute.xlu0 %1368
    %v1372 = vsel %vm57, %v1365, 0
    %v1375 = vsel %vm57, %v1366, 0
    %1377 = vmatprep.subr.mxu0 0.0
    %1378 = vmatpush1.msra.mxu0 %v46
    %1379 = vmatprep.subr.mxu0 0.0
    %1380 = vmatpush1.msra.mxu0 %v47
    %1381 = vmatprep.subr.mxu0 0.0
    %1382 = vmatpush1.msra.mxu0 %v48
    %1383 = vmatprep.subr.mxu0 0.0
    %1384 = vmatpush1.msra.mxu0 %v49
    %1385 = vmatprep.subr.mxu0 0.0
    %1386 = vmatpush1.msra.mxu0 0.0
    %1387 = vmatprep.subr.mxu0 0.0
    %1388 = vmatpush1.msra.mxu0 0.0
    %1389 = vmatprep.subr.mxu0 0.0
    %1390 = vmatpush1.msra.mxu0 0.0
    %1391 = vmatprep.subr.mxu0 0.0
    %1392 = vmatpush1.msra.mxu0 0.0
    %1393 = vmatprep.subr.mxu0 0.0
    %1394 = vmatpush1.msra.mxu0 0.0
    %1395 = vmatprep.subr.mxu0 0.0
    %1396 = vmatpush1.msra.mxu0 0.0
    %1397 = vmatprep.subr.mxu0 0.0
    %1398 = vmatpush1.msra.mxu0 0.0
    %1399 = vmatprep.subr.mxu0 0.0
    %1400 = vmatpush1.msra.mxu0 0.0
    %1401 = vmatprep.subr.mxu0 0.0
    %1402 = vmatpush1.msra.mxu0 0.0
    %1403 = vmatprep.subr.mxu0 0.0
    %1404 = vmatpush1.msra.mxu0 0.0
    %1405 = vmatprep.subr.mxu0 0.0
    %1406 = vmatpush1.msra.mxu0 0.0
    %1407 = vmatprep.subr.mxu0 0.0
    %1408 = vmatpush1.msra.mxu0 0.0
    %1409 = vmatprep.subr.mxu0 0.0
    %1410 = vmatpush1.msra.mxu0 0.0
    %1411 = vmatprep.subr.mxu0 0.0
    %1412 = vmatpush1.msra.mxu0 0.0
    %1413 = vmatprep.subr.mxu0 0.0
    %1414 = vmatpush1.msra.mxu0 0.0
    %1415 = vmatprep.subr.mxu0 0.0
    %1416 = vmatpush1.msra.mxu0 0.0
    %1417 = vmatprep.subr.mxu0 0.0
    %1418 = vmatpush1.msra.mxu0 0.0
    %1419 = vmatprep.subr.mxu0 0.0
    %1420 = vmatpush1.msra.mxu0 0.0
    %1421 = vmatprep.subr.mxu0 0.0
    %1422 = vmatpush1.msra.mxu0 0.0
    %1423 = vmatprep.subr.mxu0 0.0
    %1424 = vmatpush1.msra.mxu0 0.0
    %1425 = vmatprep.subr.mxu0 0.0
    %1426 = vmatpush1.msra.mxu0 0.0
    %1427 = vmatprep.subr.mxu0 0.0
    %1428 = vmatpush1.msra.mxu0 0.0
    %1429 = vmatprep.subr.mxu0 0.0
    %1430 = vmatpush1.msra.mxu0 0.0
    %1431 = vmatprep.subr.mxu0 0.0
    %1432 = vmatpush1.msra.mxu0 0.0
    %1433 = vmatprep.subr.mxu0 0.0
    %1434 = vmatpush1.msra.mxu0 0.0
    %1435 = vmatprep.subr.mxu0 0.0
    %1436 = vmatpush1.msra.mxu0 0.0
    %1437 = vmatprep.subr.mxu0 0.0
    %1438 = vmatpush1.msra.mxu0 0.0
    %1439 = vmatprep.subr.mxu0 0.0
    %1440 = vmatpush1.msra.mxu0 0.0
    %1441 = vmatprep.mubr.f32.mxu0 0.0
    %1442 = vmatmul.mubr.f32.gmra.mrb[0].mxu0 %v1372
    %v1443 = vpop.f32.mrb[0].mxu0
    %v1444 = vadd.f32 %v1369, %v1443
    %v1445 = vpop.f32.mrb[0].mxu0
    %1446 = vmatprep.mubr.f32.mxu0 0.0
    %1447 = vmatmul.mubr.f32.gmra.mrb[0].mxu0 %v1375
    %v1448 = vpop.f32.mrb[0].mxu0
    %v1449 = vadd.f32 %v1369, %v1448
    %v1450 = vpop.f32.mrb[0].mxu0
    %1451 = vdwg.mxu0
    %v1452 = vmul.f32 %v1444, 0.5
    %v1453 = vmul.f32 %v1449, 0.5
    %v1454 = vmul.f32 %v1444, 0.044715
    %v1455 = vmul.f32 %v1449, 0.044715
    %v1456 = vmul.f32 %v1454, %v1444
    %v1457 = vmul.f32 %v1455, %v1449
    %v1458 = vmul.f32 %v1456, %v1444
    %v1459 = vmul.f32 %v1457, %v1449
    %v1460 = vadd.f32 %v1444, %v1458
    %v1461 = vadd.f32 %v1449, %v1459
    %v1462 = vmul.f32 %v1460, 0.7978846
    %v1463 = vmul.f32 %v1461, 0.7978846
    %v1464 = vtanh.pop %v1462
    %v1465 = vtanh.pop %v1463
    %v1466 = vadd.f32 %v1464, 1.0
    %v1467 = vadd.f32 %v1465, 1.0
    %v1468 = vmul.f32 %v1452, %v1466
    %v1469 = vmul.f32 %v1453, %v1467
    %1478 = vrot.lane.b32.xlu0 %v46, 64
    %v1479 = vpop.permute.xlu0 %1478
    %1480 = vrot.lane.b32.xlu0 %v47, 64
    %v1481 = vpop.permute.xlu0 %1480
    %1482 = vrot.lane.b32.xlu0 %v48, 64
    %v1483 = vpop.permute.xlu0 %1482
    %1484 = vrot.lane.b32.xlu0 %v49, 64
    %v1485 = vpop.permute.xlu0 %1484
    %1486 = vrot.lane.b32.xlu0 %v50, 64
    %v1487 = vpop.permute.xlu0 %1486
    %1488 = vrot.lane.b32.xlu0 %v51, 64
    %v1489 = vpop.permute.xlu0 %1488
    %1490 = vrot.lane.b32.xlu0 %v52, 64
    %v1491 = vpop.permute.xlu0 %1490
    %1492 = vrot.lane.b32.xlu0 %v53, 64
    %v1493 = vpop.permute.xlu0 %1492
    %1502 = vrot.lane.b32.xlu0 %v55, 32
    %v1503 = vpop.permute.xlu0 %1502
    %vm1505 = vcmask 523264
    %v1507 = vsel %vm1505, %v1468, 0
    %v1510 = vsel %vm1505, %v1469, 0
    %1512 = vmatprep.subr.mxu0 0.0
    %1513 = vmatpush1.msra.mxu0 %v1479
    %1514 = vmatprep.subr.mxu0 0.0
    %1515 = vmatpush1.msra.mxu0 %v1481
    %1516 = vmatprep.subr.mxu0 0.0
    %1517 = vmatpush1.msra.mxu0 %v1483
    %1518 = vmatprep.subr.mxu0 0.0
    %1519 = vmatpush1.msra.mxu0 %v1485
    %1520 = vmatprep.subr.mxu0 0.0
    %1521 = vmatpush1.msra.mxu0 %v1487
    %1522 = vmatprep.subr.mxu0 0.0
    %1523 = vmatpush1.msra.mxu0 %v1489
    %1524 = vmatprep.subr.mxu0 0.0
    %1525 = vmatpush1.msra.mxu0 %v1491
    %1526 = vmatprep.subr.mxu0 0.0
    %1527 = vmatpush1.msra.mxu0 %v1493
    %1528 = vmatprep.subr.mxu0 0.0
    %1529 = vmatpush1.msra.mxu0 0.0
    %1530 = vmatprep.subr.mxu0 0.0
    %1531 = vmatpush1.msra.mxu0 0.0
    %1532 = vmatprep.subr.mxu0 0.0
    %1533 = vmatpush1.msra.mxu0 0.0
    %1534 = vmatprep.subr.mxu0 0.0
    %1535 = vmatpush1.msra.mxu0 0.0
    %1536 = vmatprep.subr.mxu0 0.0
    %1537 = vmatpush1.msra.mxu0 0.0
    %1538 = vmatprep.subr.mxu0 0.0
    %1539 = vmatpush1.msra.mxu0 0.0
    %1540 = vmatprep.subr.mxu0 0.0
    %1541 = vmatpush1.msra.mxu0 0.0
    %1542 = vmatprep.subr.mxu0 0.0
    %1543 = vmatpush1.msra.mxu0 0.0
    %1544 = vmatprep.subr.mxu0 0.0
    %1545 = vmatpush1.msra.mxu0 0.0
    %1546 = vmatprep.subr.mxu0 0.0
    %1547 = vmatpush1.msra.mxu0 0.0
    %1548 = vmatprep.subr.mxu0 0.0
    %1549 = vmatpush1.msra.mxu0 0.0
    %1550 = vmatprep.subr.mxu0 0.0
    %1551 = vmatpush1.msra.mxu0 0.0
    %1552 = vmatprep.subr.mxu0 0.0
    %1553 = vmatpush1.msra.mxu0 0.0
    %1554 = vmatprep.subr.mxu0 0.0
    %1555 = vmatpush1.msra.mxu0 0.0
    %1556 = vmatprep.subr.mxu0 0.0
    %1557 = vmatpush1.msra.mxu0 0.0
    %1558 = vmatprep.subr.mxu0 0.0
    %1559 = vmatpush1.msra.mxu0 0.0
    %1560 = vmatprep.subr.mxu0 0.0
    %1561 = vmatpush1.msra.mxu0 0.0
    %1562 = vmatprep.subr.mxu0 0.0
    %1563 = vmatpush1.msra.mxu0 0.0
    %1564 = vmatprep.subr.mxu0 0.0
    %1565 = vmatpush1.msra.mxu0 0.0
    %1566 = vmatprep.subr.mxu0 0.0
    %1567 = vmatpush1.msra.mxu0 0.0
    %1568 = vmatprep.subr.mxu0 0.0
    %1569 = vmatpush1.msra.mxu0 0.0
    %1570 = vmatprep.subr.mxu0 0.0
    %1571 = vmatpush1.msra.mxu0 0.0
    %1572 = vmatprep.subr.mxu0 0.0
    %1573 = vmatpush1.msra.mxu0 0.0
    %1574 = vmatprep.subr.mxu0 0.0
    %1575 = vmatpush1.msra.mxu0 0.0
    %1576 = vmatprep.mubr.f32.mxu0 0.0
    %1577 = vmatmul.mubr.f32.gmra.mrb[0].mxu0 %v1507
    %v1578 = vpop.f32.mrb[0].mxu0
    %v1579 = vadd.f32 %v1503, %v1578
    %v1580 = vpop.f32.mrb[0].mxu0
    %1581 = vmatprep.mubr.f32.mxu0 0.0
    %1582 = vmatmul.mubr.f32.gmra.mrb[0].mxu0 %v1510
    %v1583 = vpop.f32.mrb[0].mxu0
    %v1584 = vadd.f32 %v1503, %v1583
    %v1585 = vpop.f32.mrb[0].mxu0
    %1586 = vdwg.mxu0
    %v1587 = vadd.f32 %v1365, %v1579
    %v1588 = vadd.f32 %v1366, %v1584
    %v1589 = vsel %vm57, %v1587, 0.0
    %1590 = vadd.xlane.f32.xlu0 %v1589
    %v1591 = vpop.xlane.xlu0 %1590
    %v1592 = vsel %vm57, %v1588, 0.0
    %1593 = vadd.xlane.f32.xlu0 %v1592
    %v1594 = vpop.xlane.xlu0 %1593
    %v1595 = vmul.f32 %v1591, %v1338
    %v1596 = vmul.f32 %v1594, %v1338
    %v1597 = vsub.f32 %v1587, %v1595
    %v1598 = vsub.f32 %v1588, %v1596
    %v1599 = vmul.f32 %v1597, %v1597
    %v1600 = vmul.f32 %v1598, %v1598
    %v1601 = vsel %vm57, %v1599, 0.0
    %1602 = vadd.xlane.f32.xlu0 %v1601
    %v1603 = vpop.xlane.xlu0 %1602
    %v1604 = vsel %vm57, %v1600, 0.0
    %1605 = vadd.xlane.f32.xlu0 %v1604
    %v1606 = vpop.xlane.xlu0 %1605
    %v1607 = vmul.f32 %v1603, %v1338
    %v1608 = vmul.f32 %v1606, %v1338
    %v1609 = vadd.f32 %v1607, 1e-05
    %v1610 = vadd.f32 %v1608, 1e-05
    %v1611 = vrsqrt.pop %v1609
    %v1612 = vrsqrt.pop %v1610
    %v1613 = vmul.f32 %v1597, %v1611
    %v1614 = vmul.f32 %v1598, %v1612
    %1615 = vrot.lane.b32.xlu0 %v56, 64
    %v1616 = vpop.permute.xlu0 %1615
    %v1618 = vmul.f32 %v1613, %v1616
    %v1619 = vmul.f32 %v1614, %v1616
    %1620 = vrot.lane.b32.xlu0 %v56, 32
    %v1621 = vpop.permute.xlu0 %1620
    %v1623 = vadd.f32 %v1618, %v1621
    %v1624 = vadd.f32 %v1619, %v1621
    %1625 = vst.msk [vmem:[#allocation7] sm:$0xff] %vm57, %v1623
    %1626 = vst.msk [vmem:[#allocation7 + $0x8] sm:$0xff] %vm57, %v1624
    // Predicated region
    $region18: #{transformer_encoder_layer.1} parent=1 // pred_check
      _
    $region19: #{transformer_encoder_layer.1} parent=1 // pred_check_branch
      %1628 = sbr.rel (0) target = $region21
    $region20: #{transformer_encoder_layer.1} parent=1 // pred_region
      %s1630 = ssub.s32 256, 256
      %1631 = vsyncadd [#allocation4], %s1630
      %s1632 = sshll.u32 [#allocation7], 4
      %s1633 = int_to_ptr.vmem [resolvable:$true] %s1632
      %1638 = dma.vmem_to_hbm [thread:$0]  %s1633, 256, %s2, [#allocation4], 128, 128, 8
    $region21: #{transformer_encoder_layer.1} parent=1 // pred_fallthru
      _
    // Predicated region
    $region22: #{transformer_encoder_layer.1} parent=1 // pred_check
      _
    $region23: #{transformer_encoder_layer.1} parent=1 // pred_check_branch
      %1640 = sbr.rel (0) target = $region25
    $region24: #{transformer_encoder_layer.1} parent=1 // pred_region
      %1641 = dma.done [#allocation4], 256
    $region25: #{transformer_encoder_layer.1} parent=1 // pred_fallthru
      _
    %1642 = vsyncpa [#allocation3], 1
    %1643 = vsyncpa [#allocation6], 1
    %1644 = vsyncpa [#allocation4], 1

</llo_original>
